<compile_context>
chip_gen: v7x
topology: tpu7x:2x2x1
jax: 0.10.0
libtpu: 0.0.40
codegen_flags: <defaults>
</compile_context>

<pallas_src>
import jax
import jax.numpy as jnp
from jax.experimental import pallas as pl
from jax.experimental.pallas import tpu as pltpu


def _round_up(x, m):
    return (x + m - 1) // m * m


# ----------------------------------------------------------------------------
# Pallas kernels
# ----------------------------------------------------------------------------
def conv_mm_bias_relu_kernel(wt_ref, b_ref, p_ref, o_ref):
    """Transposed conv-as-matmul with BN already folded into (wt, b).

    wt_ref: (Cout, K)   f32, folded weights (VMEM-resident, constant index map)
    b_ref : (Cout, 1)   f32, folded bias
    p_ref : (K, tm)     f32, one lane-dense tile of transposed im2col patches
    o_ref : (Cout, tm)  f32, lane-dense output tile
    """
    acc = jnp.dot(wt_ref[...], p_ref[...], preferred_element_type=jnp.float32)
    o_ref[...] = jnp.maximum(acc + b_ref[...], 0.0).astype(o_ref.dtype)


def linear_logsoftmax_kernel(x_ref, w_ref, b_ref, o_ref):
    """fc1 + log_softmax(dim=1), all f32 (tiny tensor, one fused launch).

    x_ref: (B, F), w_ref: (F, O), b_ref: (1, O), o_ref: (B, O)
    """
    logits = jnp.dot(x_ref[...], w_ref[...],
                     preferred_element_type=jnp.float32) + b_ref[...]
    m = jnp.max(logits, axis=1, keepdims=True)
    z = logits - m
    lse = jnp.log(jnp.sum(jnp.exp(z), axis=1, keepdims=True))
    o_ref[...] = (z - lse).astype(o_ref.dtype)


# ----------------------------------------------------------------------------
# Wrappers
# ----------------------------------------------------------------------------
def conv_bn_relu(x_nhwc, w, b, gamma, beta, mean, var, *, eps=1e-5):
    """Conv(5,3,pad=1) + folded BN(eval) + ReLU.

    x_nhwc: (B, H, W, Cin); w: (Kh, Kw, Cin, Cout); b/gamma/beta/mean/var: (1, Cout).
    Returns NHWC (B, Ho, Wo, Cout) float32.
    """
    kh, kw, cin, cout = w.shape

    # ---- fold BN into the conv weight/bias (plain JAX, once, in f32) ----
    scale = gamma * jax.lax.rsqrt(var + eps)                  # (1, Cout)
    w_folded = w.reshape(kh * kw * cin, cout) * scale         # (K, Cout) f32
    b_folded = (b - mean) * scale + beta                      # (1, Cout) f32
    wt = w_folded.T                                           # (Cout, K) f32
    bt = b_folded.T                                           # (Cout, 1) f32

    # ---- im2col, transposed so M (=B*Ho*Wo) lands on the lane axis ----
    xp = jnp.pad(x_nhwc, ((0, 0), (1, 1), (1, 1), (0, 0)))    # padding = 1
    batch, hp, wp, _ = xp.shape
    ho, wo = hp - kh + 1, wp - kw + 1
    K = kh * kw * cin
    M = batch * ho * wo
    # TODO(synk): for production sizes, replace this materialized im2col with
    # in-kernel shifted-matmul accumulation over the kh*kw taps (DMA padded row
    # bands) to avoid the x(kh*kw) HBM duplication; negligible at these shapes.
    cols = [xp[:, i:i + ho, j:j + wo, :] for i in range(kh) for j in range(kw)]
    pt = (jnp.stack(cols, axis=0)            # (Kh*Kw, B, Ho, Wo, Cin)
            .transpose(0, 4, 1, 2, 3)        # (Kh*Kw, Cin, B, Ho, Wo)
            .reshape(K, M)
            .astype(jnp.float32))            # f32 operand (portable MXU dot)

    # ---- lane-dense M tiling with a real pipelined grid ----
    tm = min(512, _round_up(M, 128))
    mpad = _round_up(M, tm)
    if mpad != M:
        pt = jnp.pad(pt, ((0, 0), (0, mpad - M)))

    out_t = pl.pallas_call(
        conv_mm_bias_relu_kernel,
        out_shape=jax.ShapeDtypeStruct((cout, mpad), jnp.float32),
        grid=(mpad // tm,),
        in_specs=[
            pl.BlockSpec((cout, K), lambda i: (0, 0)),   # weights: VMEM-resident
            pl.BlockSpec((cout, 1), lambda i: (0, 0)),   # bias: VMEM-resident
            pl.BlockSpec((K, tm), lambda i: (0, i)),     # patches: pipelined over M
        ],
        out_specs=pl.BlockSpec((cout, tm), lambda i: (0, i)),
        compiler_params=pltpu.CompilerParams(
            dimension_semantics=("parallel",),
            vmem_limit_bytes=32 * 1024 * 1024,
        ),
    )(wt, bt, pt)

    # (Cout, B*Ho*Wo) -> NHWC for the next layer (small XLA layout glue)
    return out_t[:, :M].reshape(cout, batch, ho, wo).transpose(1, 2, 3, 0)


def maxpool2d(y, ph, pw):
    """MaxPool2d((ph, pw)), floor mode, on NHWC.  Pure XLA window reduction —
    a dedicated Pallas kernel here only adds an extra HBM gather round-trip."""
    batch, h, w, c = y.shape
    ho, wo = h // ph, w // pw
    yc = y[:, :ho * ph, :wo * pw, :]
    return jnp.max(yc.reshape(batch, ho, ph, wo, pw, c), axis=(2, 4))


def linear_log_softmax(x, w, b):
    batch, feat = x.shape
    n_out = w.shape[1]
    return pl.pallas_call(
        linear_logsoftmax_kernel,
        out_shape=jax.ShapeDtypeStruct((batch, n_out), jnp.float32),
        grid=(1,),
        in_specs=[
            pl.BlockSpec((batch, feat), lambda i: (0, 0)),
            pl.BlockSpec((feat, n_out), lambda i: (0, 0)),
            pl.BlockSpec((1, n_out), lambda i: (0, 0)),
        ],
        out_specs=pl.BlockSpec((batch, n_out), lambda i: (0, 0)),
        compiler_params=pltpu.CompilerParams(
            dimension_semantics=("arbitrary",)),
    )(x, w, b)


# ----------------------------------------------------------------------------
# Full forward pass
# ----------------------------------------------------------------------------
@jax.jit
def cnn_linear_forward(x, params):
    """x: (B, H, W) float32, exactly as the torch forward (before unsqueeze)."""
    y = x[..., None]  # unsqueeze(dim=1) -> channel-last singleton (NHWC)
    y = conv_bn_relu(y, params["w1"], params["b1"], *params["bn1"])
    y = maxpool2d(y, 5, 2)
    y = conv_bn_relu(y, params["w2"], params["b2"], *params["bn2"])
    y = maxpool2d(y, 5, 2)
    y = conv_bn_relu(y, params["w3"], params["b3"], *params["bn3"])
    y = maxpool2d(y, 5, 2)
    batch = y.shape[0]
    # Flatten(1,-1) on NCHW  ->  reorder NHWC to (C,H,W) then flatten (tiny tensor).
    z = jnp.transpose(y, (0, 3, 1, 2)).reshape(batch, -1)
    # dropout: inference-mode identity
    return linear_log_softmax(z, params["fc_w"], params["fc_b"])


# ----------------------------------------------------------------------------
# Deterministic synthetic parameter init
# ----------------------------------------------------------------------------
def init_params(key, n_channel, n_output, flat_features):
    ks = jax.random.split(key, 16)

    def conv_block(kw_key, kb_key, bn_key, cin, cout):
        fan_in = cin * 5 * 3
        w = jax.random.normal(kw_key, (5, 3, cin, cout), jnp.float32)
        w = w / jnp.sqrt(jnp.float32(fan_in))
        b = 0.01 * jax.random.normal(kb_key, (1, cout), jnp.float32)
        g_k, be_k, mu_k, var_k = jax.random.split(bn_key, 4)
        gamma = 1.0 + 0.1 * jax.random.normal(g_k, (1, cout), jnp.float32)
        beta = 0.1 * jax.random.normal(be_k, (1, cout), jnp.float32)
        mean = 0.1 * jax.random.normal(mu_k, (1, cout), jnp.float32)
        var = jax.random.uniform(var_k, (1, cout), jnp.float32, 0.5, 1.5)
        return w, b, (gamma, beta, mean, var)

    w1, b1, bn1 = conv_block(ks[0], ks[1], ks[2], 1, n_channel)
    w2, b2, bn2 = conv_block(ks[3], ks[4], ks[5], n_channel, 2 * n_channel)
    w3, b3, bn3 = conv_block(ks[6], ks[7], ks[8], 2 * n_channel, 4 * n_channel)
    fc_w = jax.random.normal(ks[9], (flat_features, n_output), jnp.float32)
    fc_w = fc_w / jnp.sqrt(jnp.float32(flat_features))
    fc_b = 0.01 * jax.random.normal(ks[10], (1, n_output), jnp.float32)
    return dict(w1=w1, b1=b1, bn1=bn1, w2=w2, b2=b2, bn2=bn2,
                w3=w3, b3=b3, bn3=bn3, fc_w=fc_w, fc_b=fc_b)


if __name__ == "__main__":
    # Small shapes consistent with the forward graph:
    #   H: 190 -conv-> 188 -pool-> 37 -conv-> 35 -pool-> 7 -conv-> 5 -pool-> 1
    #   W:  16 -conv->  16 -pool->  8 -conv->  8 -pool-> 4 -conv-> 4 -pool-> 2
    B, H, W = 2, 190, 16
    n_channel, n_output = 4, 10
    flat_features = 4 * n_channel * 1 * 2  # = 32 (66048 in the full-size module)

    key = jax.random.PRNGKey(0)
    k_x, k_p = jax.random.split(key)
    x = jax.random.normal(k_x, (B, H, W), jnp.float32)
    params = init_params(k_p, n_channel, n_output, flat_features)

    out = cnn_linear_forward(x, params)
    out = jax.block_until_ready(out)

    assert out.shape == (B, n_output), out.shape
    assert bool(jnp.all(jnp.isfinite(out)))
    # log_softmax rows must (approximately) exponentiate-sum to 1
    row_sums = jnp.sum(jnp.exp(out), axis=1)
    assert bool(jnp.all(jnp.abs(row_sums - 1.0) < 1e-3)), row_sums

    print("KERNEL_OK")
</pallas_src>

<mosaic_0001>
module attributes {stable_mosaic.version = 11 : i64} {
  func.func @conv_mm_bias_relu_kernel(%arg0: i32, %arg1: memref<4x15xf32, #tpu.memory_space<vmem>>, %arg2: memref<4x1xf32, #tpu.memory_space<vmem>>, %arg3: memref<15x512xf32, #tpu.memory_space<vmem>>, %arg4: memref<4x512xf32, #tpu.memory_space<vmem>>) attributes {dimension_semantics = [#tpu.dimension_semantics<parallel>], iteration_bounds = array<i64: 12>, scalar_prefetch = 0 : i64, scratch_operands = 0 : i64, tpu.core_type = #tpu.core_type<tc>, window_params = [{pipeline_mode = #tpu.pipeline_mode<synchronous>, transform_indices = @transform_0, window_bounds = array<i64: 4, 15>}, {pipeline_mode = #tpu.pipeline_mode<synchronous>, transform_indices = @transform_1, window_bounds = array<i64: 4, 1>}, {transform_indices = @transform_2, window_bounds = array<i64: 15, 512>}, {transform_indices = @transform_3, window_bounds = array<i64: 4, 512>}]} {
    %c0 = arith.constant 0 : index
    %c0_0 = arith.constant 0 : index
    %0 = vector.load %arg1[%c0, %c0_0] : memref<4x15xf32, #tpu.memory_space<vmem>>, vector<4x15xf32>
    %c0_1 = arith.constant 0 : index
    %c0_2 = arith.constant 0 : index
    %1 = vector.load %arg3[%c0_1, %c0_2] : memref<15x512xf32, #tpu.memory_space<vmem>>, vector<15x512xf32>
    %cst = arith.constant dense<0.000000e+00> : vector<4x512xf32>
    %2 = tpu.matmul %0, %1, %cst {dimension_numbers = #tpu.dot_dimension_numbers<[1], [0], [0], [1], [0, 0, 1, 1], [], []>} : vector<4x15xf32>, vector<15x512xf32>, vector<4x512xf32> -> vector<4x512xf32>
    %c0_3 = arith.constant 0 : index
    %c0_4 = arith.constant 0 : index
    %3 = vector.load %arg2[%c0_3, %c0_4] : memref<4x1xf32, #tpu.memory_space<vmem>>, vector<4x1xf32>
    %4 = vector.broadcast %3 : vector<4x1xf32> to vector<4x512xf32>
    %5 = arith.addf %2, %4 : vector<4x512xf32>
    %cst_5 = arith.constant 0.000000e+00 : f32
    %6 = vector.broadcast %cst_5 : f32 to vector<4x512xf32>
    %7 = arith.maximumf %5, %6 : vector<4x512xf32>
    %c0_6 = arith.constant 0 : index
    %c0_7 = arith.constant 0 : index
    %8 = vector.load %arg4[%c0_6, %c0_7] : memref<4x512xf32, #tpu.memory_space<vmem>>, vector<4x512xf32>
    tpu.vector_store %arg4[%c0_6, %c0_7], %7 {strides = array<i32>} : memref<4x512xf32, #tpu.memory_space<vmem>>, vector<4x512xf32>,
    return
  }
  func.func @transform_0(%arg0: i32) -> (i32, i32) {
    %c0_i32 = arith.constant 0 : i32
    %c0_i32_0 = arith.constant 0 : i32
    %c0_i32_1 = arith.constant 0 : i32
    return %c0_i32, %c0_i32_0 : i32, i32
  }
  func.func @transform_1(%arg0: i32) -> (i32, i32) {
    %c0_i32 = arith.constant 0 : i32
    %c0_i32_0 = arith.constant 0 : i32
    %c0_i32_1 = arith.constant 0 : i32
    return %c0_i32, %c0_i32_0 : i32, i32
  }
  func.func @transform_2(%arg0: i32) -> (i32, i32) {
    %c0_i32 = arith.constant 0 : i32
    %c0_i32_0 = arith.constant 0 : i32
    return %c0_i32, %arg0 : i32, i32
  }
  func.func @transform_3(%arg0: i32) -> (i32, i32) {
    %c0_i32 = arith.constant 0 : i32
    %c0_i32_0 = arith.constant 0 : i32
    return %c0_i32, %arg0 : i32, i32
  }
}

module attributes {stable_mosaic.version = 11 : i64} {
  func.func @conv_mm_bias_relu_kernel(%arg0: i32, %arg1: memref<8x60xf32, #tpu.memory_space<vmem>>, %arg2: memref<8x1xf32, #tpu.memory_space<vmem>>, %arg3: memref<60x512xf32, #tpu.memory_space<vmem>>, %arg4: memref<8x512xf32, #tpu.memory_space<vmem>>) attributes {dimension_semantics = [#tpu.dimension_semantics<parallel>], iteration_bounds = array<i64: 2>, scalar_prefetch = 0 : i64, scratch_operands = 0 : i64, tpu.core_type = #tpu.core_type<tc>, window_params = [{pipeline_mode = #tpu.pipeline_mode<synchronous>, transform_indices = @transform_0, window_bounds = array<i64: 8, 60>}, {pipeline_mode = #tpu.pipeline_mode<synchronous>, transform_indices = @transform_1, window_bounds = array<i64: 8, 1>}, {transform_indices = @transform_2, window_bounds = array<i64: 60, 512>}, {transform_indices = @transform_3, window_bounds = array<i64: 8, 512>}]} {
    %c0 = arith.constant 0 : index
    %c0_0 = arith.constant 0 : index
    %0 = vector.load %arg1[%c0, %c0_0] : memref<8x60xf32, #tpu.memory_space<vmem>>, vector<8x60xf32>
    %c0_1 = arith.constant 0 : index
    %c0_2 = arith.constant 0 : index
    %1 = vector.load %arg3[%c0_1, %c0_2] : memref<60x512xf32, #tpu.memory_space<vmem>>, vector<60x512xf32>
    %cst = arith.constant dense<0.000000e+00> : vector<8x512xf32>
    %2 = tpu.matmul %0, %1, %cst {dimension_numbers = #tpu.dot_dimension_numbers<[1], [0], [0], [1], [0, 0, 1, 1], [], []>} : vector<8x60xf32>, vector<60x512xf32>, vector<8x512xf32> -> vector<8x512xf32>
    %c0_3 = arith.constant 0 : index
    %c0_4 = arith.constant 0 : index
    %3 = vector.load %arg2[%c0_3, %c0_4] : memref<8x1xf32, #tpu.memory_space<vmem>>, vector<8x1xf32>
    %4 = vector.broadcast %3 : vector<8x1xf32> to vector<8x512xf32>
    %5 = arith.addf %2, %4 : vector<8x512xf32>
    %cst_5 = arith.constant 0.000000e+00 : f32
    %6 = vector.broadcast %cst_5 : f32 to vector<8x512xf32>
    %7 = arith.maximumf %5, %6 : vector<8x512xf32>
    %c0_6 = arith.constant 0 : index
    %c0_7 = arith.constant 0 : index
    %8 = vector.load %arg4[%c0_6, %c0_7] : memref<8x512xf32, #tpu.memory_space<vmem>>, vector<8x512xf32>
    tpu.vector_store %arg4[%c0_6, %c0_7], %7 {strides = array<i32>} : memref<8x512xf32, #tpu.memory_space<vmem>>, vector<8x512xf32>,
    return
  }
  func.func @transform_0(%arg0: i32) -> (i32, i32) {
    %c0_i32 = arith.constant 0 : i32
    %c0_i32_0 = arith.constant 0 : i32
    %c0_i32_1 = arith.constant 0 : i32
    return %c0_i32, %c0_i32_0 : i32, i32
  }
  func.func @transform_1(%arg0: i32) -> (i32, i32) {
    %c0_i32 = arith.constant 0 : i32
    %c0_i32_0 = arith.constant 0 : i32
    %c0_i32_1 = arith.constant 0 : i32
    return %c0_i32, %c0_i32_0 : i32, i32
  }
  func.func @transform_2(%arg0: i32) -> (i32, i32) {
    %c0_i32 = arith.constant 0 : i32
    %c0_i32_0 = arith.constant 0 : i32
    return %c0_i32, %arg0 : i32, i32
  }
  func.func @transform_3(%arg0: i32) -> (i32, i32) {
    %c0_i32 = arith.constant 0 : i32
    %c0_i32_0 = arith.constant 0 : i32
    return %c0_i32, %arg0 : i32, i32
  }
}

module attributes {stable_mosaic.version = 11 : i64} {
  func.func @conv_mm_bias_relu_kernel(%arg0: i32, %arg1: memref<16x120xf32, #tpu.memory_space<vmem>>, %arg2: memref<16x1xf32, #tpu.memory_space<vmem>>, %arg3: memref<120x128xf32, #tpu.memory_space<vmem>>, %arg4: memref<16x128xf32, #tpu.memory_space<vmem>>) attributes {dimension_semantics = [#tpu.dimension_semantics<parallel>], iteration_bounds = array<i64: 1>, scalar_prefetch = 0 : i64, scratch_operands = 0 : i64, tpu.core_type = #tpu.core_type<tc>, window_params = [{pipeline_mode = #tpu.pipeline_mode<synchronous>, transform_indices = @transform_0, window_bounds = array<i64: 16, 120>}, {pipeline_mode = #tpu.pipeline_mode<synchronous>, transform_indices = @transform_1, window_bounds = array<i64: 16, 1>}, {transform_indices = @transform_2, window_bounds = array<i64: 120, 128>}, {transform_indices = @transform_3, window_bounds = array<i64: 16, 128>}]} {
    %c0 = arith.constant 0 : index
    %c0_0 = arith.constant 0 : index
    %0 = vector.load %arg1[%c0, %c0_0] : memref<16x120xf32, #tpu.memory_space<vmem>>, vector<16x120xf32>
    %c0_1 = arith.constant 0 : index
    %c0_2 = arith.constant 0 : index
    %1 = vector.load %arg3[%c0_1, %c0_2] : memref<120x128xf32, #tpu.memory_space<vmem>>, vector<120x128xf32>
    %cst = arith.constant dense<0.000000e+00> : vector<16x128xf32>
    %2 = tpu.matmul %0, %1, %cst {dimension_numbers = #tpu.dot_dimension_numbers<[1], [0], [0], [1], [0, 0, 1, 1], [], []>} : vector<16x120xf32>, vector<120x128xf32>, vector<16x128xf32> -> vector<16x128xf32>
    %c0_3 = arith.constant 0 : index
    %c0_4 = arith.constant 0 : index
    %3 = vector.load %arg2[%c0_3, %c0_4] : memref<16x1xf32, #tpu.memory_space<vmem>>, vector<16x1xf32>
    %4 = vector.broadcast %3 : vector<16x1xf32> to vector<16x128xf32>
    %5 = arith.addf %2, %4 : vector<16x128xf32>
    %cst_5 = arith.constant 0.000000e+00 : f32
    %6 = vector.broadcast %cst_5 : f32 to vector<16x128xf32>
    %7 = arith.maximumf %5, %6 : vector<16x128xf32>
    %c0_6 = arith.constant 0 : index
    %c0_7 = arith.constant 0 : index
    %8 = vector.load %arg4[%c0_6, %c0_7] : memref<16x128xf32, #tpu.memory_space<vmem>>, vector<16x128xf32>
    tpu.vector_store %arg4[%c0_6, %c0_7], %7 {strides = array<i32>} : memref<16x128xf32, #tpu.memory_space<vmem>>, vector<16x128xf32>,
    return
  }
  func.func @transform_0(%arg0: i32) -> (i32, i32) {
    %c0_i32 = arith.constant 0 : i32
    %c0_i32_0 = arith.constant 0 : i32
    %c0_i32_1 = arith.constant 0 : i32
    return %c0_i32, %c0_i32_0 : i32, i32
  }
  func.func @transform_1(%arg0: i32) -> (i32, i32) {
    %c0_i32 = arith.constant 0 : i32
    %c0_i32_0 = arith.constant 0 : i32
    %c0_i32_1 = arith.constant 0 : i32
    return %c0_i32, %c0_i32_0 : i32, i32
  }
  func.func @transform_2(%arg0: i32) -> (i32, i32) {
    %c0_i32 = arith.constant 0 : i32
    %c0_i32_0 = arith.constant 0 : i32
    return %c0_i32, %arg0 : i32, i32
  }
  func.func @transform_3(%arg0: i32) -> (i32, i32) {
    %c0_i32 = arith.constant 0 : i32
    %c0_i32_0 = arith.constant 0 : i32
    return %c0_i32, %arg0 : i32, i32
  }
}

module attributes {stable_mosaic.version = 11 : i64} {
  func.func @linear_logsoftmax_kernel(%arg0: i32, %arg1: memref<2x32xf32, #tpu.memory_space<vmem>>, %arg2: memref<32x10xf32, #tpu.memory_space<vmem>>, %arg3: memref<1x10xf32, #tpu.memory_space<vmem>>, %arg4: memref<2x10xf32, #tpu.memory_space<vmem>>) attributes {dimension_semantics = [#tpu.dimension_semantics<arbitrary>], iteration_bounds = array<i64: 1>, scalar_prefetch = 0 : i64, scratch_operands = 0 : i64, tpu.core_type = #tpu.core_type<tc>, window_params = [{pipeline_mode = #tpu.pipeline_mode<synchronous>, transform_indices = @transform_0, window_bounds = array<i64: 2, 32>}, {pipeline_mode = #tpu.pipeline_mode<synchronous>, transform_indices = @transform_1, window_bounds = array<i64: 32, 10>}, {pipeline_mode = #tpu.pipeline_mode<synchronous>, transform_indices = @transform_2, window_bounds = array<i64: 1, 10>}, {pipeline_mode = #tpu.pipeline_mode<synchronous>, transform_indices = @transform_3, window_bounds = array<i64: 2, 10>}]} {
    %c0 = arith.constant 0 : index
    %c0_0 = arith.constant 0 : index
    %0 = vector.load %arg1[%c0, %c0_0] : memref<2x32xf32, #tpu.memory_space<vmem>>, vector<2x32xf32>
    %c0_1 = arith.constant 0 : index
    %c0_2 = arith.constant 0 : index
    %1 = vector.load %arg2[%c0_1, %c0_2] : memref<32x10xf32, #tpu.memory_space<vmem>>, vector<32x10xf32>
    %cst = arith.constant dense<0.000000e+00> : vector<2x10xf32>
    %2 = tpu.matmul %0, %1, %cst {dimension_numbers = #tpu.dot_dimension_numbers<[1], [0], [0], [1], [0, 0, 1, 1], [], []>} : vector<2x32xf32>, vector<32x10xf32>, vector<2x10xf32> -> vector<2x10xf32>
    %c0_3 = arith.constant 0 : index
    %c0_4 = arith.constant 0 : index
    %3 = vector.load %arg3[%c0_3, %c0_4] : memref<1x10xf32, #tpu.memory_space<vmem>>, vector<1x10xf32>
    %4 = vector.broadcast %3 : vector<1x10xf32> to vector<2x10xf32>
    %5 = arith.addf %2, %4 : vector<2x10xf32>
    %cst_5 = arith.constant dense<0xFF800000> : vector<2xf32>
    %6 = vector.multi_reduction <maximumf>, %5, %cst_5 [1] : vector<2x10xf32> to vector<2xf32>
    %7 = vector.shape_cast %6 : vector<2xf32> to vector<2x1xf32>
    %8 = vector.broadcast %7 : vector<2x1xf32> to vector<2x10xf32>
    %9 = arith.subf %5, %8 : vector<2x10xf32>
    %10 = math.exp %9 : vector<2x10xf32>
    %cst_6 = arith.constant dense<0.000000e+00> : vector<2xf32>
    %11 = vector.multi_reduction <add>, %10, %cst_6 [1] : vector<2x10xf32> to vector<2xf32>
    %12 = vector.shape_cast %11 : vector<2xf32> to vector<2x1xf32>
    %13 = math.log %12 : vector<2x1xf32>
    %14 = vector.broadcast %13 : vector<2x1xf32> to vector<2x10xf32>
    %15 = arith.subf %9, %14 : vector<2x10xf32>
    %c0_7 = arith.constant 0 : index
    %c0_8 = arith.constant 0 : index
    %16 = vector.load %arg4[%c0_7, %c0_8] : memref<2x10xf32, #tpu.memory_space<vmem>>, vector<2x10xf32>
    tpu.vector_store %arg4[%c0_7, %c0_8], %15 {strides = array<i32>} : memref<2x10xf32, #tpu.memory_space<vmem>>, vector<2x10xf32>,
    return
  }
  func.func @transform_0(%arg0: i32) -> (i32, i32) {
    %c0_i32 = arith.constant 0 : i32
    %c0_i32_0 = arith.constant 0 : i32
    %c0_i32_1 = arith.constant 0 : i32
    return %c0_i32, %c0_i32_0 : i32, i32
  }
  func.func @transform_1(%arg0: i32) -> (i32, i32) {
    %c0_i32 = arith.constant 0 : i32
    %c0_i32_0 = arith.constant 0 : i32
    %c0_i32_1 = arith.constant 0 : i32
    return %c0_i32, %c0_i32_0 : i32, i32
  }
  func.func @transform_2(%arg0: i32) -> (i32, i32) {
    %c0_i32 = arith.constant 0 : i32
    %c0_i32_0 = arith.constant 0 : i32
    %c0_i32_1 = arith.constant 0 : i32
    return %c0_i32, %c0_i32_0 : i32, i32
  }
  func.func @transform_3(%arg0: i32) -> (i32, i32) {
    %c0_i32 = arith.constant 0 : i32
    %c0_i32_0 = arith.constant 0 : i32
    %c0_i32_1 = arith.constant 0 : i32
    return %c0_i32, %c0_i32_0 : i32, i32
  }
}

</mosaic_0001>

<llo_original>
// kernel: cnn_linear_forward.4
$region0: #{cnn_linear_forward.4}
  #allocation0 [shape = 'u32[]', space=smem, size = 0x4, offset = 0x4, fixed_abs, tag = 'smem constant byte address 0x4 - core index']
  #allocation1 [shape = 'u32[144,128]{1,0:T(1,128)}', space=vmem, size = 0x12000, scoped, tag = 'internal scratch']
  %s0 = inlined_call_operand.vmem [shape: f32[4,15], index: 0, kind: input, shape index: {}]
  %s1 = inlined_call_operand.vmem [shape: f32[4,1], index: 1, kind: input, shape index: {}]
  %s2 = inlined_call_operand.vmem [shape: f32[15,6144], index: 2, kind: input, shape index: {}]
  %s3 = inlined_call_operand.vmem [shape: f32[4,6144], index: 3, kind: output, shape index: {}]
  %s4 = sld [smem:[#allocation0]]
  $region68: #{cnn_linear_forward.4} parent=0
    _
  %s6 = ssub.s32 1, %s4
  %s7 = scalar_select 0, %s6, %s4
  $region1: #{cnn_linear_forward.4} parent=0
    #allocation2 [shape = 'u8[65536]{0}', space=vmem, size = 0x10000, scoped, tag = 'input window, operand 2']
    loop: start=0, step=1, limit=14
    $region2: #{cnn_linear_forward.4} parent=1 // loop_pre_header
      _
    $region3: #{cnn_linear_forward.4} parent=1 // loop_header
      %s9 = sphi 0, %s13
      %p10 = scmp.ge.s32.totalorder %s9, 14
      %s17 = sphi 0, %s17
      %s19 = sphi 0, %s17
      %s20 = sphi 0, %s19
      %s34 = sphi 0, %s20
      %s38 = sphi 0, %s38
      %s40 = sphi 0, %s38
      %s41 = sphi 0, %s40
      %s55 = sphi 0, %s41
      %s61 = sphi 0, %s63
      %s64 = sphi 0, %s61
      %s65 = sphi 0, %s64
      %s81 = sphi 0, %s65
      %s87 = sphi 0, %s89
      %s90 = sphi 0, %s87
      %s91 = sphi 0, %s90
      %s107 = sphi 0, %s91
    $region4: #{cnn_linear_forward.4} parent=1 // loop_header_branch
      %12 = sbr.rel (%p10) target = $region8
    $region5: #{cnn_linear_forward.4} parent=1 // loop_body
      %s14 = ssub.s32 %s9, 1
      %s15 = ssub.s32 %s9, 2
      %s16 = sadd.s32 %s9, 1
      %s18 = sadd.s32 %s17, 1
      %p21 = scmp.eq.s32.totalorder %s9, 11
      %p22 = scmp.ne.s32.totalorder %s17, %s19
      %p23 = scmp.eq.s32.totalorder %s9, 0
      %p24 = por %p22, %p23
      %p25 = scmp.ne.s32.totalorder %s17, %s19
      %p26 = scmp.eq.s32.totalorder %s14, 11
      %p27 = por %p25, %p26
      %p28 = scmp.ne.s32.totalorder %s19, %s20
      %p29 = scmp.eq.s32.totalorder %s14, 0
      %p30 = por %p28, %p29
      %p31 = scmp.ne.s32.totalorder %s19, %s20
      %p32 = scmp.eq.s32.totalorder %s15, 11
      %p33 = por %p31, %p32
      %p35 = scmp.ne.s32.totalorder %s20, %s34
      %p36 = scmp.eq.s32.totalorder %s15, 0
      %p37 = por %p35, %p36
      %s39 = sadd.s32 %s38, 1
      %p42 = scmp.eq.s32.totalorder %s9, 11
      %p43 = scmp.ne.s32.totalorder %s38, %s40
      %p44 = scmp.eq.s32.totalorder %s9, 0
      %p45 = por %p43, %p44
      %p46 = scmp.ne.s32.totalorder %s38, %s40
      %p47 = scmp.eq.s32.totalorder %s14, 11
      %p48 = por %p46, %p47
      %p49 = scmp.ne.s32.totalorder %s40, %s41
      %p50 = scmp.eq.s32.totalorder %s14, 0
      %p51 = por %p49, %p50
      %p52 = scmp.ne.s32.totalorder %s40, %s41
      %p53 = scmp.eq.s32.totalorder %s15, 11
      %p54 = por %p52, %p53
      %p56 = scmp.ne.s32.totalorder %s41, %s55
      %p57 = scmp.eq.s32.totalorder %s15, 0
      %p58 = por %p56, %p57
      %s59 = ssub.s32 %s9, %s16
      %p60 = scmp.eq.s32.totalorder %s59, 0
      %s62 = sadd.s32 %s61, 1
      %s63 = scalar_select %p60, %s61, %s62
      %p66 = pneg %p60
      %p67 = scmp.eq.s32.totalorder %s9, 11
      %p68 = por %p66, %p67
      %p69 = scmp.ne.s32.totalorder %s61, %s64
      %p70 = scmp.eq.s32.totalorder %s9, 0
      %p71 = por %p69, %p70
      %p72 = scmp.ne.s32.totalorder %s61, %s64
      %p73 = scmp.eq.s32.totalorder %s14, 11
      %p74 = por %p72, %p73
      %p75 = scmp.ne.s32.totalorder %s64, %s65
      %p76 = scmp.eq.s32.totalorder %s14, 0
      %p77 = por %p75, %p76
      %p78 = scmp.ne.s32.totalorder %s64, %s65
      %p79 = scmp.eq.s32.totalorder %s15, 11
      %p80 = por %p78, %p79
      %p82 = scmp.ne.s32.totalorder %s65, %s81
      %p83 = scmp.eq.s32.totalorder %s15, 0
      %p84 = por %p82, %p83
      %s85 = ssub.s32 %s9, %s16
      %p86 = scmp.eq.s32.totalorder %s85, 0
      %s88 = sadd.s32 %s87, 1
      %s89 = scalar_select %p86, %s87, %s88
      %p92 = pneg %p86
      %p93 = scmp.eq.s32.totalorder %s9, 11
      %p94 = por %p92, %p93
      %p95 = scmp.ne.s32.totalorder %s87, %s90
      %p96 = scmp.eq.s32.totalorder %s9, 0
      %p97 = por %p95, %p96
      %p98 = scmp.ne.s32.totalorder %s87, %s90
      %p99 = scmp.eq.s32.totalorder %s14, 11
      %p100 = por %p98, %p99
      %p101 = scmp.ne.s32.totalorder %s90, %s91
      %p102 = scmp.eq.s32.totalorder %s14, 0
      %p103 = por %p101, %p102
      %p104 = scmp.ne.s32.totalorder %s90, %s91
      %p105 = scmp.eq.s32.totalorder %s15, 11
      %p106 = por %p104, %p105
      %p108 = scmp.ne.s32.totalorder %s91, %s107
      %p109 = scmp.eq.s32.totalorder %s15, 0
      %p110 = por %p108, %p109
      %p111 = scmp.le.s32.totalorder 1, %s9
      %p112 = scmp.lt.s32.totalorder %s9, 13
      %p113 = pnand %p111, %p112
      %p114 = pneg %p113
      // Predicated region
      $region9: #{cnn_linear_forward.4} parent=5 // pred_check
        _
      $region10: #{cnn_linear_forward.4} parent=5 // pred_check_branch
        %116 = sbr.rel (%p113) target = $region12
      $region11: #{cnn_linear_forward.4} parent=5 // pred_region
        %s117 = ssub.s32 %s9, 1
        // Predicated region
        $region13: #{cnn_linear_forward.4} parent=11 // pred_check
          %p118 = pneg %p30
        $region14: #{cnn_linear_forward.4} parent=11 // pred_check_branch
          %120 = sbr.rel (%p118) target = $region16
        $region15: #{cnn_linear_forward.4} parent=11 // pred_region
          _
        $region16: #{cnn_linear_forward.4} parent=11 // pred_fallthru
          _
        // Predicated region
        $region17: #{cnn_linear_forward.4} parent=11 // pred_check
          %p121 = pneg %p51
        $region18: #{cnn_linear_forward.4} parent=11 // pred_check_branch
          %123 = sbr.rel (%p121) target = $region20
        $region19: #{cnn_linear_forward.4} parent=11 // pred_region
          _
        $region20: #{cnn_linear_forward.4} parent=11 // pred_fallthru
          _
      $region12: #{cnn_linear_forward.4} parent=5 // pred_fallthru
        _
      %p124 = scmp.lt.s32.totalorder %s9, 12
      // Predicated region
      $region21: #{cnn_linear_forward.4} parent=5 // pred_check
        %p125 = pneg %p124
      $region22: #{cnn_linear_forward.4} parent=5 // pred_check_branch
        %127 = sbr.rel (%p125) target = $region24
      $region23: #{cnn_linear_forward.4} parent=5 // pred_region
        // Predicated region
        $region25: #{cnn_linear_forward.4} parent=23 // pred_check
          %p128 = pneg %p71
        $region26: #{cnn_linear_forward.4} parent=23 // pred_check_branch
          %130 = sbr.rel (%p128) target = $region28
        $region27: #{cnn_linear_forward.4} parent=23 // pred_region
          %s131 = sand.u32 %s61, 1
          %s132 = sand.u32 %s61, 1
          %s133 = smul.addr %s132, 64
          %s134 = scalar_lea.vmem [#allocation2], %s133
          %s135 = smul.u32 4, %s9
          %s136 = smul.addr %s135, 8
          %s137 = scalar_lea.vmem %s2, %s136
          // Predicated region
          $region29: #{cnn_linear_forward.4} parent=27 // pred_check
            _
          $region30: #{cnn_linear_forward.4} parent=27 // pred_check_branch
            %139 = sbr.rel (0) target = $region32
          $region31: #{cnn_linear_forward.4} parent=27 // pred_region
            // Predicated region
            $region33: #{cnn_linear_forward.4} parent=31 // pred_check
              _
            $region34: #{cnn_linear_forward.4} parent=31 // pred_check_branch
              %141 = sbr.rel (0) target = $region36
            $region35: #{cnn_linear_forward.4} parent=31 // pred_region
              loop: start=0, step=1, limit=1
              $region37: #{cnn_linear_forward.4} parent=35 // loop_pre_header
                _
              $region38: #{cnn_linear_forward.4} parent=35 // loop_header
                %s143 = sphi 0, %s147
                %p144 = scmp.ge.s32.totalorder %s143, 1
                %s148 = sphi %s137, %s137
                %s149 = sphi %s134, %s134
              $region39: #{cnn_linear_forward.4} parent=35 // loop_header_branch
                %146 = sbr.rel (%p144) target = $region43
              $region40: #{cnn_linear_forward.4} parent=35 // loop_body
                %v150 = vld [vmem:[%s148] sm:$0xff]
                %151 = vst [vmem:[%s149] sm:$0xff] %v150
                %v152 = vld [vmem:[%s148 + $0x8] sm:$0xff]
                %153 = vst [vmem:[%s149 + $0x8] sm:$0xff] %v152
                %v154 = vld [vmem:[%s148 + $0x10] sm:$0xff]
                %155 = vst [vmem:[%s149 + $0x10] sm:$0xff] %v154
                %v156 = vld [vmem:[%s148 + $0x18] sm:$0xff]
                %157 = vst [vmem:[%s149 + $0x18] sm:$0xff] %v156
                %v158 = vld [vmem:[%s148 + $0x180] sm:$0xff]
                %159 = vst [vmem:[%s149 + $0x20] sm:$0xff] %v158
                %v160 = vld [vmem:[%s148 + $0x188] sm:$0xff]
                %161 = vst [vmem:[%s149 + $0x28] sm:$0xff] %v160
                %v162 = vld [vmem:[%s148 + $0x190] sm:$0xff]
                %163 = vst [vmem:[%s149 + $0x30] sm:$0xff] %v162
                %v164 = vld [vmem:[%s148 + $0x198] sm:$0xff]
                %165 = vst [vmem:[%s149 + $0x38] sm:$0xff] %v164
              $region41: #{cnn_linear_forward.4} parent=35 // loop_footer
                %s147 = sadd.s32 1, %s143
              $region42: #{cnn_linear_forward.4} parent=35 // loop_footer_branch
                %142 = sbr.rel target = $region38
              $region43: #{cnn_linear_forward.4} parent=35 // loop_exit
                _
            $region36: #{cnn_linear_forward.4} parent=31 // pred_fallthru
              _
            // Predicated region
            $region44: #{cnn_linear_forward.4} parent=31 // pred_check
              _
            $region45: #{cnn_linear_forward.4} parent=31 // pred_check_branch
              %167 = sbr.rel target = $region47
            $region46: #{cnn_linear_forward.4} parent=31 // pred_region
              _
            $region47: #{cnn_linear_forward.4} parent=31 // pred_fallthru
              _
          $region32: #{cnn_linear_forward.4} parent=27 // pred_fallthru
            _
          %168 = vnop
        $region28: #{cnn_linear_forward.4} parent=23 // pred_fallthru
          _
      $region24: #{cnn_linear_forward.4} parent=5 // pred_fallthru
        _
      %p169 = scmp.le.s32.totalorder 1, %s9
      %p170 = scmp.lt.s32.totalorder %s9, 13
      %p171 = pnand %p169, %p170
      %p172 = pneg %p171
      // Predicated region
      $region48: #{cnn_linear_forward.4} parent=5 // pred_check
        _
      $region49: #{cnn_linear_forward.4} parent=5 // pred_check_branch
        %174 = sbr.rel (%p171) target = $region51
      $region50: #{cnn_linear_forward.4} parent=5 // pred_region
        %s175 = ssub.s32 %s9, 1
        %s176 = sand.u32 %s64, 1
        %s177 = sand.u32 %s64, 1
        %s178 = smul.addr %s177, 64
        %s179 = scalar_lea.vmem [#allocation2], %s178
        // Predicated region
        $region52: #{cnn_linear_forward.4} parent=50 // pred_check
          %p180 = pneg %p77
        $region53: #{cnn_linear_forward.4} parent=50 // pred_check_branch
          %182 = sbr.rel (%p180) target = $region55
        $region54: #{cnn_linear_forward.4} parent=50 // pred_region
          _
        $region55: #{cnn_linear_forward.4} parent=50 // pred_fallthru
          _
        %p183 = pneg %p30
        %p184 = pneg %p27
        %p185 = pneg %p51
        %p186 = pneg %p48
        %s187 = sand.u32 %s64, 1
        %s188 = sand.u32 %s64, 1
        %s189 = smul.addr %s188, 64
        %s190 = scalar_lea.vmem [#allocation2], %s189
        %p191 = pneg %p77
        %p192 = pneg %p74
        %p193 = pneg %p103
        %p194 = pneg %p100
        %s195 = smul.u32 4, %s14
        %p196 = scmp.lt.s32.totalorder %s195, 47
        %s197 = scalar_select %p196, %s195, 47
        %s198 = smul.addr %s197, 4
        %s199 = scalar_lea.vmem %s3, %s198
        %s200 = smul.u32 4, %s14
        %s201 = smul.u32 4, %s14
        %p202 = scmp.lt.s32.totalorder %s201, 47
        %s203 = scalar_select %p202, %s201, 47
        %s204 = smul.addr %s203, 4
        %s205 = scalar_lea.vmem %s3, %s204
        %s206 = smul.u32 4, %s14
        %v207 = vld [vmem:[%s0] sm:$0xf]
        %v208 = vld [vmem:[%s179] sm:$0xff]
        %v209 = vld [vmem:[%s179 + $0x8] sm:$0xff]
        %v210 = vld [vmem:[%s179 + $0x10] sm:$0xff]
        %v211 = vld [vmem:[%s179 + $0x18] sm:$0xff]
        %v212 = vld [vmem:[%s179 + $0x20] sm:$0x7f]
        %v213 = vld [vmem:[%s179 + $0x28] sm:$0x7f]
        %v214 = vld [vmem:[%s179 + $0x30] sm:$0x7f]
        %v215 = vld [vmem:[%s179 + $0x38] sm:$0x7f]
        %v216 = vld [vmem:[%s1] sm:$0xf]
        %218 = vset.pattern.permute.xlu0 0
        %219 = vperm.xlu0 %218, %v216
        %v220 = vpop.permute.xlu0 %219
        %vm222 = vcmask 121856
        %v224 = vsel %vm222, %v207, 0
        %vm226 = vcmask 1046528
        %v228 = vsel %vm226, %v212, 0
        %v231 = vsel %vm226, %v213, 0
        %v234 = vsel %vm226, %v214, 0
        %v237 = vsel %vm226, %v215, 0
        %239 = vmatprep.subr.mxu0 %v209
        %240 = vmatpush1.msra.mxu0 %v208
        %241 = vmatprep.subr.mxu0 %v231
        %242 = vmatpush1.msra.mxu0 %v228
        %243 = vmatprep.subr.mxu0 0.0
        %244 = vmatpush1.msra.mxu0 0.0
        %245 = vmatprep.subr.mxu0 0.0
        %246 = vmatpush1.msra.mxu0 0.0
        %247 = vmatprep.subr.mxu0 0.0
        %248 = vmatpush1.msra.mxu0 0.0
        %249 = vmatprep.subr.mxu0 0.0
        %250 = vmatpush1.msra.mxu0 0.0
        %251 = vmatprep.subr.mxu0 0.0
        %252 = vmatpush1.msra.mxu0 0.0
        %253 = vmatprep.subr.mxu0 0.0
        %254 = vmatpush1.msra.mxu0 0.0
        %255 = vmatprep.subr.mxu0 0.0
        %256 = vmatpush1.msra.mxu0 0.0
        %257 = vmatprep.subr.mxu0 0.0
        %258 = vmatpush1.msra.mxu0 0.0
        %259 = vmatprep.subr.mxu0 0.0
        %260 = vmatpush1.msra.mxu0 0.0
        %261 = vmatprep.subr.mxu0 0.0
        %262 = vmatpush1.msra.mxu0 0.0
        %263 = vmatprep.subr.mxu0 0.0
        %264 = vmatpush1.msra.mxu0 0.0
        %265 = vmatprep.subr.mxu0 0.0
        %266 = vmatpush1.msra.mxu0 0.0
        %267 = vmatprep.subr.mxu0 0.0
        %268 = vmatpush1.msra.mxu0 0.0
        %269 = vmatprep.subr.mxu0 0.0
        %270 = vmatpush1.msra.mxu0 0.0
        %271 = vmatprep.subr.mxu0 0.0
        %272 = vmatpush1.msra.mxu0 0.0
        %273 = vmatprep.subr.mxu0 0.0
        %274 = vmatpush1.msra.mxu0 0.0
        %275 = vmatprep.subr.mxu0 0.0
        %276 = vmatpush1.msra.mxu0 0.0
        %277 = vmatprep.subr.mxu0 0.0
        %278 = vmatpush1.msra.mxu0 0.0
        %279 = vmatprep.subr.mxu0 0.0
        %280 = vmatpush1.msra.mxu0 0.0
        %281 = vmatprep.subr.mxu0 0.0
        %282 = vmatpush1.msra.mxu0 0.0
        %283 = vmatprep.subr.mxu0 0.0
        %284 = vmatpush1.msra.mxu0 0.0
        %285 = vmatprep.subr.mxu0 0.0
        %286 = vmatpush1.msra.mxu0 0.0
        %287 = vmatprep.subr.mxu0 0.0
        %288 = vmatpush1.msra.mxu0 0.0
        %289 = vmatprep.subr.mxu0 0.0
        %290 = vmatpush1.msra.mxu0 0.0
        %291 = vmatprep.subr.mxu0 0.0
        %292 = vmatpush1.msra.mxu0 0.0
        %293 = vmatprep.subr.mxu0 0.0
        %294 = vmatpush1.msra.mxu0 0.0
        %295 = vmatprep.subr.mxu0 0.0
        %296 = vmatpush1.msra.mxu0 0.0
        %297 = vmatprep.subr.mxu0 0.0
        %298 = vmatpush1.msra.mxu0 0.0
        %299 = vmatprep.subr.mxu0 0.0
        %300 = vmatpush1.msra.mxu0 0.0
        %301 = vmatprep.subr.mxu0 0.0
        %302 = vmatpush1.msra.mxu0 0.0
        %303 = vmatprep.mubr.f32.mxu0 0.0
        %304 = vmatmul.mubr.f32.gmra.mrb[0].mxu0 %v224
        %v305 = vpop.f32.mrb[0].mxu0
        %v306 = vadd.f32 %v220, %v305
        %v307 = vpop.f32.mrb[0].mxu0
        %v308 = vadd.f32 %v220, %v307
        %309 = vdwg.mxu0
        %310 = vmatprep.subr.mxu0 %v211
        %311 = vmatpush1.msra.mxu0 %v210
        %312 = vmatprep.subr.mxu0 %v237
        %313 = vmatpush1.msra.mxu0 %v234
        %314 = vmatprep.subr.mxu0 0.0
        %315 = vmatpush1.msra.mxu0 0.0
        %316 = vmatprep.subr.mxu0 0.0
        %317 = vmatpush1.msra.mxu0 0.0
        %318 = vmatprep.subr.mxu0 0.0
        %319 = vmatpush1.msra.mxu0 0.0
        %320 = vmatprep.subr.mxu0 0.0
        %321 = vmatpush1.msra.mxu0 0.0
        %322 = vmatprep.subr.mxu0 0.0
        %323 = vmatpush1.msra.mxu0 0.0
        %324 = vmatprep.subr.mxu0 0.0
        %325 = vmatpush1.msra.mxu0 0.0
        %326 = vmatprep.subr.mxu0 0.0
        %327 = vmatpush1.msra.mxu0 0.0
        %328 = vmatprep.subr.mxu0 0.0
        %329 = vmatpush1.msra.mxu0 0.0
        %330 = vmatprep.subr.mxu0 0.0
        %331 = vmatpush1.msra.mxu0 0.0
        %332 = vmatprep.subr.mxu0 0.0
        %333 = vmatpush1.msra.mxu0 0.0
        %334 = vmatprep.subr.mxu0 0.0
        %335 = vmatpush1.msra.mxu0 0.0
        %336 = vmatprep.subr.mxu0 0.0
        %337 = vmatpush1.msra.mxu0 0.0
        %338 = vmatprep.subr.mxu0 0.0
        %339 = vmatpush1.msra.mxu0 0.0
        %340 = vmatprep.subr.mxu0 0.0
        %341 = vmatpush1.msra.mxu0 0.0
        %342 = vmatprep.subr.mxu0 0.0
        %343 = vmatpush1.msra.mxu0 0.0
        %344 = vmatprep.subr.mxu0 0.0
        %345 = vmatpush1.msra.mxu0 0.0
        %346 = vmatprep.subr.mxu0 0.0
        %347 = vmatpush1.msra.mxu0 0.0
        %348 = vmatprep.subr.mxu0 0.0
        %349 = vmatpush1.msra.mxu0 0.0
        %350 = vmatprep.subr.mxu0 0.0
        %351 = vmatpush1.msra.mxu0 0.0
        %352 = vmatprep.subr.mxu0 0.0
        %353 = vmatpush1.msra.mxu0 0.0
        %354 = vmatprep.subr.mxu0 0.0
        %355 = vmatpush1.msra.mxu0 0.0
        %356 = vmatprep.subr.mxu0 0.0
        %357 = vmatpush1.msra.mxu0 0.0
        %358 = vmatprep.subr.mxu0 0.0
        %359 = vmatpush1.msra.mxu0 0.0
        %360 = vmatprep.subr.mxu0 0.0
        %361 = vmatpush1.msra.mxu0 0.0
        %362 = vmatprep.subr.mxu0 0.0
        %363 = vmatpush1.msra.mxu0 0.0
        %364 = vmatprep.subr.mxu0 0.0
        %365 = vmatpush1.msra.mxu0 0.0
        %366 = vmatprep.subr.mxu0 0.0
        %367 = vmatpush1.msra.mxu0 0.0
        %368 = vmatprep.subr.mxu0 0.0
        %369 = vmatpush1.msra.mxu0 0.0
        %370 = vmatprep.subr.mxu0 0.0
        %371 = vmatpush1.msra.mxu0 0.0
        %372 = vmatprep.subr.mxu0 0.0
        %373 = vmatpush1.msra.mxu0 0.0
        %374 = vmatprep.mubr.f32.mxu0 0.0
        %375 = vmatmul.mubr.f32.gmra.mrb[0].mxu0 %v224
        %v376 = vpop.f32.mrb[0].mxu0
        %v377 = vadd.f32 %v220, %v376
        %v378 = vpop.f32.mrb[0].mxu0
        %v379 = vadd.f32 %v220, %v378
        %380 = vdwg.mxu0
        %v381 = vmax.f32 %v306, 0.0
        %v382 = vmax.f32 %v308, 0.0
        %v383 = vmax.f32 %v377, 0.0
        %v384 = vmax.f32 %v379, 0.0
        %v389 = vcombine.low %v381, %v382
        %v390 = vcombine.low %v383, %v384
        %393 = vst [vmem:[%s205] sm:$0xff] %v389
        %394 = vst [vmem:[%s205 + $0x8] sm:$0xff] %v390
        %s395 = smul.u32 4, %s14
        %p396 = scmp.lt.s32.totalorder %s395, 47
        %s397 = scalar_select %p396, %s395, 47
        %s398 = smul.addr %s397, 4
        %s399 = scalar_lea.vmem %s3, %s398
        // Predicated region
        $region56: #{cnn_linear_forward.4} parent=50 // pred_check
          %p400 = pneg %p100
        $region57: #{cnn_linear_forward.4} parent=50 // pred_check_branch
          %402 = sbr.rel (%p400) target = $region59
        $region58: #{cnn_linear_forward.4} parent=50 // pred_region
          %s403 = smul.u32 4, %s14
        $region59: #{cnn_linear_forward.4} parent=50 // pred_fallthru
          _
      $region51: #{cnn_linear_forward.4} parent=5 // pred_fallthru
        _
      %p404 = scmp.le.s32.totalorder 2, %s9
      // Predicated region
      $region60: #{cnn_linear_forward.4} parent=5 // pred_check
        %p405 = pneg %p404
      $region61: #{cnn_linear_forward.4} parent=5 // pred_check_branch
        %407 = sbr.rel (%p405) target = $region63
      $region62: #{cnn_linear_forward.4} parent=5 // pred_region
        %s408 = ssub.s32 %s9, 2
        // Predicated region
        $region64: #{cnn_linear_forward.4} parent=62 // pred_check
          %p409 = pneg %p106
        $region65: #{cnn_linear_forward.4} parent=62 // pred_check_branch
          %411 = sbr.rel (%p409) target = $region67
        $region66: #{cnn_linear_forward.4} parent=62 // pred_region
          %s412 = smul.u32 4, %s15
          %p413 = scmp.lt.s32.totalorder %s412, 47
          %s414 = scalar_select %p413, %s412, 47
          %s415 = smul.addr %s414, 4
          %s416 = scalar_lea.vmem %s3, %s415
        $region67: #{cnn_linear_forward.4} parent=62 // pred_fallthru
          _
      $region63: #{cnn_linear_forward.4} parent=5 // pred_fallthru
        _
    $region6: #{cnn_linear_forward.4} parent=1 // loop_footer
      %s13 = sadd.s32 1, %s9
    $region7: #{cnn_linear_forward.4} parent=1 // loop_footer_branch
      %8 = sbr.rel target = $region3
    $region8: #{cnn_linear_forward.4} parent=1 // loop_exit
      _

// kernel: cnn_linear_forward.5
$region0: #{cnn_linear_forward.5}
  #allocation0 [shape = 'u32[]', space=smem, size = 0x4, offset = 0x4, fixed_abs, tag = 'smem constant byte address 0x4 - core index']
  #allocation1 [shape = 'u32[144,128]{1,0:T(1,128)}', space=vmem, size = 0x12000, scoped, tag = 'internal scratch']
  %s0 = inlined_call_operand.vmem [shape: f32[8,60], index: 0, kind: input, shape index: {}]
  %s1 = inlined_call_operand.vmem [shape: f32[8,1], index: 1, kind: input, shape index: {}]
  %s2 = inlined_call_operand.vmem [shape: f32[60,1024], index: 2, kind: input, shape index: {}]
  %s3 = inlined_call_operand.vmem [shape: f32[8,1024], index: 3, kind: output, shape index: {}]
  %s4 = sld [smem:[#allocation0]]
  $region68: #{cnn_linear_forward.5} parent=0
    _
  %s6 = ssub.s32 1, %s4
  %s7 = scalar_select 0, %s6, %s4
  $region1: #{cnn_linear_forward.5} parent=0
    #allocation2 [shape = 'u8[262144]{0}', space=vmem, size = 0x40000, scoped, tag = 'input window, operand 2']
    loop: start=0, step=1, limit=4
    $region2: #{cnn_linear_forward.5} parent=1 // loop_pre_header
      _
    $region3: #{cnn_linear_forward.5} parent=1 // loop_header
      %s9 = sphi 0, %s13
      %p10 = scmp.ge.s32.totalorder %s9, 4
      %s17 = sphi 0, %s17
      %s19 = sphi 0, %s17
      %s20 = sphi 0, %s19
      %s34 = sphi 0, %s20
      %s38 = sphi 0, %s38
      %s40 = sphi 0, %s38
      %s41 = sphi 0, %s40
      %s55 = sphi 0, %s41
      %s61 = sphi 0, %s63
      %s64 = sphi 0, %s61
      %s65 = sphi 0, %s64
      %s81 = sphi 0, %s65
      %s87 = sphi 0, %s89
      %s90 = sphi 0, %s87
      %s91 = sphi 0, %s90
      %s107 = sphi 0, %s91
    $region4: #{cnn_linear_forward.5} parent=1 // loop_header_branch
      %12 = sbr.rel (%p10) target = $region8
    $region5: #{cnn_linear_forward.5} parent=1 // loop_body
      %s14 = ssub.s32 %s9, 1
      %s15 = ssub.s32 %s9, 2
      %s16 = sadd.s32 %s9, 1
      %s18 = sadd.s32 %s17, 1
      %p21 = scmp.eq.s32.totalorder %s9, 1
      %p22 = scmp.ne.s32.totalorder %s17, %s19
      %p23 = scmp.eq.s32.totalorder %s9, 0
      %p24 = por %p22, %p23
      %p25 = scmp.ne.s32.totalorder %s17, %s19
      %p26 = scmp.eq.s32.totalorder %s14, 1
      %p27 = por %p25, %p26
      %p28 = scmp.ne.s32.totalorder %s19, %s20
      %p29 = scmp.eq.s32.totalorder %s14, 0
      %p30 = por %p28, %p29
      %p31 = scmp.ne.s32.totalorder %s19, %s20
      %p32 = scmp.eq.s32.totalorder %s15, 1
      %p33 = por %p31, %p32
      %p35 = scmp.ne.s32.totalorder %s20, %s34
      %p36 = scmp.eq.s32.totalorder %s15, 0
      %p37 = por %p35, %p36
      %s39 = sadd.s32 %s38, 1
      %p42 = scmp.eq.s32.totalorder %s9, 1
      %p43 = scmp.ne.s32.totalorder %s38, %s40
      %p44 = scmp.eq.s32.totalorder %s9, 0
      %p45 = por %p43, %p44
      %p46 = scmp.ne.s32.totalorder %s38, %s40
      %p47 = scmp.eq.s32.totalorder %s14, 1
      %p48 = por %p46, %p47
      %p49 = scmp.ne.s32.totalorder %s40, %s41
      %p50 = scmp.eq.s32.totalorder %s14, 0
      %p51 = por %p49, %p50
      %p52 = scmp.ne.s32.totalorder %s40, %s41
      %p53 = scmp.eq.s32.totalorder %s15, 1
      %p54 = por %p52, %p53
      %p56 = scmp.ne.s32.totalorder %s41, %s55
      %p57 = scmp.eq.s32.totalorder %s15, 0
      %p58 = por %p56, %p57
      %s59 = ssub.s32 %s9, %s16
      %p60 = scmp.eq.s32.totalorder %s59, 0
      %s62 = sadd.s32 %s61, 1
      %s63 = scalar_select %p60, %s61, %s62
      %p66 = pneg %p60
      %p67 = scmp.eq.s32.totalorder %s9, 1
      %p68 = por %p66, %p67
      %p69 = scmp.ne.s32.totalorder %s61, %s64
      %p70 = scmp.eq.s32.totalorder %s9, 0
      %p71 = por %p69, %p70
      %p72 = scmp.ne.s32.totalorder %s61, %s64
      %p73 = scmp.eq.s32.totalorder %s14, 1
      %p74 = por %p72, %p73
      %p75 = scmp.ne.s32.totalorder %s64, %s65
      %p76 = scmp.eq.s32.totalorder %s14, 0
      %p77 = por %p75, %p76
      %p78 = scmp.ne.s32.totalorder %s64, %s65
      %p79 = scmp.eq.s32.totalorder %s15, 1
      %p80 = por %p78, %p79
      %p82 = scmp.ne.s32.totalorder %s65, %s81
      %p83 = scmp.eq.s32.totalorder %s15, 0
      %p84 = por %p82, %p83
      %s85 = ssub.s32 %s9, %s16
      %p86 = scmp.eq.s32.totalorder %s85, 0
      %s88 = sadd.s32 %s87, 1
      %s89 = scalar_select %p86, %s87, %s88
      %p92 = pneg %p86
      %p93 = scmp.eq.s32.totalorder %s9, 1
      %p94 = por %p92, %p93
      %p95 = scmp.ne.s32.totalorder %s87, %s90
      %p96 = scmp.eq.s32.totalorder %s9, 0
      %p97 = por %p95, %p96
      %p98 = scmp.ne.s32.totalorder %s87, %s90
      %p99 = scmp.eq.s32.totalorder %s14, 1
      %p100 = por %p98, %p99
      %p101 = scmp.ne.s32.totalorder %s90, %s91
      %p102 = scmp.eq.s32.totalorder %s14, 0
      %p103 = por %p101, %p102
      %p104 = scmp.ne.s32.totalorder %s90, %s91
      %p105 = scmp.eq.s32.totalorder %s15, 1
      %p106 = por %p104, %p105
      %p108 = scmp.ne.s32.totalorder %s91, %s107
      %p109 = scmp.eq.s32.totalorder %s15, 0
      %p110 = por %p108, %p109
      %p111 = scmp.le.s32.totalorder 1, %s9
      %p112 = scmp.lt.s32.totalorder %s9, 3
      %p113 = pnand %p111, %p112
      %p114 = pneg %p113
      // Predicated region
      $region9: #{cnn_linear_forward.5} parent=5 // pred_check
        _
      $region10: #{cnn_linear_forward.5} parent=5 // pred_check_branch
        %116 = sbr.rel (%p113) target = $region12
      $region11: #{cnn_linear_forward.5} parent=5 // pred_region
        %s117 = ssub.s32 %s9, 1
        // Predicated region
        $region13: #{cnn_linear_forward.5} parent=11 // pred_check
          %p118 = pneg %p30
        $region14: #{cnn_linear_forward.5} parent=11 // pred_check_branch
          %120 = sbr.rel (%p118) target = $region16
        $region15: #{cnn_linear_forward.5} parent=11 // pred_region
          _
        $region16: #{cnn_linear_forward.5} parent=11 // pred_fallthru
          _
        // Predicated region
        $region17: #{cnn_linear_forward.5} parent=11 // pred_check
          %p121 = pneg %p51
        $region18: #{cnn_linear_forward.5} parent=11 // pred_check_branch
          %123 = sbr.rel (%p121) target = $region20
        $region19: #{cnn_linear_forward.5} parent=11 // pred_region
          _
        $region20: #{cnn_linear_forward.5} parent=11 // pred_fallthru
          _
      $region12: #{cnn_linear_forward.5} parent=5 // pred_fallthru
        _
      %p124 = scmp.lt.s32.totalorder %s9, 2
      // Predicated region
      $region21: #{cnn_linear_forward.5} parent=5 // pred_check
        %p125 = pneg %p124
      $region22: #{cnn_linear_forward.5} parent=5 // pred_check_branch
        %127 = sbr.rel (%p125) target = $region24
      $region23: #{cnn_linear_forward.5} parent=5 // pred_region
        // Predicated region
        $region25: #{cnn_linear_forward.5} parent=23 // pred_check
          %p128 = pneg %p71
        $region26: #{cnn_linear_forward.5} parent=23 // pred_check_branch
          %130 = sbr.rel (%p128) target = $region28
        $region27: #{cnn_linear_forward.5} parent=23 // pred_region
          %s131 = sand.u32 %s61, 1
          %s132 = sand.u32 %s61, 1
          %s133 = smul.addr %s132, 256
          %s134 = scalar_lea.vmem [#allocation2], %s133
          %s135 = smul.u32 4, %s9
          %s136 = smul.addr %s135, 8
          %s137 = scalar_lea.vmem %s2, %s136
          // Predicated region
          $region29: #{cnn_linear_forward.5} parent=27 // pred_check
            _
          $region30: #{cnn_linear_forward.5} parent=27 // pred_check_branch
            %139 = sbr.rel (0) target = $region32
          $region31: #{cnn_linear_forward.5} parent=27 // pred_region
            // Predicated region
            $region33: #{cnn_linear_forward.5} parent=31 // pred_check
              _
            $region34: #{cnn_linear_forward.5} parent=31 // pred_check_branch
              %141 = sbr.rel (0) target = $region36
            $region35: #{cnn_linear_forward.5} parent=31 // pred_region
              loop: start=0, step=1, limit=1
              $region37: #{cnn_linear_forward.5} parent=35 // loop_pre_header
                _
              $region38: #{cnn_linear_forward.5} parent=35 // loop_header
                %s143 = sphi 0, %s147
                %p144 = scmp.ge.s32.totalorder %s143, 1
                %s148 = sphi %s137, %s137
                %s149 = sphi %s134, %s134
              $region39: #{cnn_linear_forward.5} parent=35 // loop_header_branch
                %146 = sbr.rel (%p144) target = $region43
              $region40: #{cnn_linear_forward.5} parent=35 // loop_body
                %v150 = vld [vmem:[%s148] sm:$0xff]
                %151 = vst [vmem:[%s149] sm:$0xff] %v150
                %v152 = vld [vmem:[%s148 + $0x8] sm:$0xff]
                %153 = vst [vmem:[%s149 + $0x8] sm:$0xff] %v152
                %v154 = vld [vmem:[%s148 + $0x10] sm:$0xff]
                %155 = vst [vmem:[%s149 + $0x10] sm:$0xff] %v154
                %v156 = vld [vmem:[%s148 + $0x18] sm:$0xff]
                %157 = vst [vmem:[%s149 + $0x18] sm:$0xff] %v156
                %v158 = vld [vmem:[%s148 + $0x40] sm:$0xff]
                %159 = vst [vmem:[%s149 + $0x20] sm:$0xff] %v158
                %v160 = vld [vmem:[%s148 + $0x48] sm:$0xff]
                %161 = vst [vmem:[%s149 + $0x28] sm:$0xff] %v160
                %v162 = vld [vmem:[%s148 + $0x50] sm:$0xff]
                %163 = vst [vmem:[%s149 + $0x30] sm:$0xff] %v162
                %v164 = vld [vmem:[%s148 + $0x58] sm:$0xff]
                %165 = vst [vmem:[%s149 + $0x38] sm:$0xff] %v164
                %v166 = vld [vmem:[%s148 + $0x80] sm:$0xff]
                %167 = vst [vmem:[%s149 + $0x40] sm:$0xff] %v166
                %v168 = vld [vmem:[%s148 + $0x88] sm:$0xff]
                %169 = vst [vmem:[%s149 + $0x48] sm:$0xff] %v168
                %v170 = vld [vmem:[%s148 + $0x90] sm:$0xff]
                %171 = vst [vmem:[%s149 + $0x50] sm:$0xff] %v170
                %v172 = vld [vmem:[%s148 + $0x98] sm:$0xff]
                %173 = vst [vmem:[%s149 + $0x58] sm:$0xff] %v172
                %v174 = vld [vmem:[%s148 + $0xc0] sm:$0xff]
                %175 = vst [vmem:[%s149 + $0x60] sm:$0xff] %v174
                %v176 = vld [vmem:[%s148 + $0xc8] sm:$0xff]
                %177 = vst [vmem:[%s149 + $0x68] sm:$0xff] %v176
                %v178 = vld [vmem:[%s148 + $0xd0] sm:$0xff]
                %179 = vst [vmem:[%s149 + $0x70] sm:$0xff] %v178
                %v180 = vld [vmem:[%s148 + $0xd8] sm:$0xff]
                %181 = vst [vmem:[%s149 + $0x78] sm:$0xff] %v180
                %v182 = vld [vmem:[%s148 + $0x100] sm:$0xff]
                %183 = vst [vmem:[%s149 + $0x80] sm:$0xff] %v182
                %v184 = vld [vmem:[%s148 + $0x108] sm:$0xff]
                %185 = vst [vmem:[%s149 + $0x88] sm:$0xff] %v184
                %v186 = vld [vmem:[%s148 + $0x110] sm:$0xff]
                %187 = vst [vmem:[%s149 + $0x90] sm:$0xff] %v186
                %v188 = vld [vmem:[%s148 + $0x118] sm:$0xff]
                %189 = vst [vmem:[%s149 + $0x98] sm:$0xff] %v188
                %v190 = vld [vmem:[%s148 + $0x140] sm:$0xff]
                %191 = vst [vmem:[%s149 + $0xa0] sm:$0xff] %v190
                %v192 = vld [vmem:[%s148 + $0x148] sm:$0xff]
                %193 = vst [vmem:[%s149 + $0xa8] sm:$0xff] %v192
                %v194 = vld [vmem:[%s148 + $0x150] sm:$0xff]
                %195 = vst [vmem:[%s149 + $0xb0] sm:$0xff] %v194
                %v196 = vld [vmem:[%s148 + $0x158] sm:$0xff]
                %197 = vst [vmem:[%s149 + $0xb8] sm:$0xff] %v196
                %v198 = vld [vmem:[%s148 + $0x180] sm:$0xff]
                %199 = vst [vmem:[%s149 + $0xc0] sm:$0xff] %v198
                %v200 = vld [vmem:[%s148 + $0x188] sm:$0xff]
                %201 = vst [vmem:[%s149 + $0xc8] sm:$0xff] %v200
                %v202 = vld [vmem:[%s148 + $0x190] sm:$0xff]
                %203 = vst [vmem:[%s149 + $0xd0] sm:$0xff] %v202
                %v204 = vld [vmem:[%s148 + $0x198] sm:$0xff]
                %205 = vst [vmem:[%s149 + $0xd8] sm:$0xff] %v204
                %v206 = vld [vmem:[%s148 + $0x1c0] sm:$0xff]
                %207 = vst [vmem:[%s149 + $0xe0] sm:$0xff] %v206
                %v208 = vld [vmem:[%s148 + $0x1c8] sm:$0xff]
                %209 = vst [vmem:[%s149 + $0xe8] sm:$0xff] %v208
                %v210 = vld [vmem:[%s148 + $0x1d0] sm:$0xff]
                %211 = vst [vmem:[%s149 + $0xf0] sm:$0xff] %v210
                %v212 = vld [vmem:[%s148 + $0x1d8] sm:$0xff]
                %213 = vst [vmem:[%s149 + $0xf8] sm:$0xff] %v212
              $region41: #{cnn_linear_forward.5} parent=35 // loop_footer
                %s147 = sadd.s32 1, %s143
              $region42: #{cnn_linear_forward.5} parent=35 // loop_footer_branch
                %142 = sbr.rel target = $region38
              $region43: #{cnn_linear_forward.5} parent=35 // loop_exit
                _
            $region36: #{cnn_linear_forward.5} parent=31 // pred_fallthru
              _
            // Predicated region
            $region44: #{cnn_linear_forward.5} parent=31 // pred_check
              _
            $region45: #{cnn_linear_forward.5} parent=31 // pred_check_branch
              %215 = sbr.rel target = $region47
            $region46: #{cnn_linear_forward.5} parent=31 // pred_region
              _
            $region47: #{cnn_linear_forward.5} parent=31 // pred_fallthru
              _
          $region32: #{cnn_linear_forward.5} parent=27 // pred_fallthru
            _
          %216 = vnop
        $region28: #{cnn_linear_forward.5} parent=23 // pred_fallthru
          _
      $region24: #{cnn_linear_forward.5} parent=5 // pred_fallthru
        _
      %p217 = scmp.le.s32.totalorder 1, %s9
      %p218 = scmp.lt.s32.totalorder %s9, 3
      %p219 = pnand %p217, %p218
      %p220 = pneg %p219
      // Predicated region
      $region48: #{cnn_linear_forward.5} parent=5 // pred_check
        _
      $region49: #{cnn_linear_forward.5} parent=5 // pred_check_branch
        %222 = sbr.rel (%p219) target = $region51
      $region50: #{cnn_linear_forward.5} parent=5 // pred_region
        %s223 = ssub.s32 %s9, 1
        %s224 = sand.u32 %s64, 1
        %s225 = sand.u32 %s64, 1
        %s226 = smul.addr %s225, 256
        %s227 = scalar_lea.vmem [#allocation2], %s226
        // Predicated region
        $region52: #{cnn_linear_forward.5} parent=50 // pred_check
          %p228 = pneg %p77
        $region53: #{cnn_linear_forward.5} parent=50 // pred_check_branch
          %230 = sbr.rel (%p228) target = $region55
        $region54: #{cnn_linear_forward.5} parent=50 // pred_region
          _
        $region55: #{cnn_linear_forward.5} parent=50 // pred_fallthru
          _
        %p231 = pneg %p30
        %p232 = pneg %p27
        %p233 = pneg %p51
        %p234 = pneg %p48
        %s235 = sand.u32 %s64, 1
        %s236 = sand.u32 %s64, 1
        %s237 = smul.addr %s236, 256
        %s238 = scalar_lea.vmem [#allocation2], %s237
        %p239 = pneg %p77
        %p240 = pneg %p74
        %p241 = pneg %p103
        %p242 = pneg %p100
        %s243 = smul.u32 4, %s14
        %p244 = scmp.lt.s32.totalorder %s243, 7
        %s245 = scalar_select %p244, %s243, 7
        %s246 = smul.addr %s245, 8
        %s247 = scalar_lea.vmem %s3, %s246
        %s248 = smul.u32 4, %s14
        %s249 = smul.u32 4, %s14
        %p250 = scmp.lt.s32.totalorder %s249, 7
        %s251 = scalar_select %p250, %s249, 7
        %s252 = smul.addr %s251, 8
        %s253 = scalar_lea.vmem %s3, %s252
        %s254 = smul.u32 4, %s14
        %v255 = vld [vmem:[%s0] sm:$0xff]
        %v256 = vld [vmem:[%s227] sm:$0xff]
        %v257 = vld [vmem:[%s227 + $0x8] sm:$0xff]
        %v258 = vld [vmem:[%s227 + $0x10] sm:$0xff]
        %v259 = vld [vmem:[%s227 + $0x18] sm:$0xff]
        %v260 = vld [vmem:[%s227 + $0x20] sm:$0xff]
        %v261 = vld [vmem:[%s227 + $0x28] sm:$0xff]
        %v262 = vld [vmem:[%s227 + $0x30] sm:$0xff]
        %v263 = vld [vmem:[%s227 + $0x38] sm:$0xff]
        %v264 = vld [vmem:[%s227 + $0x40] sm:$0xff]
        %v265 = vld [vmem:[%s227 + $0x48] sm:$0xff]
        %v266 = vld [vmem:[%s227 + $0x50] sm:$0xff]
        %v267 = vld [vmem:[%s227 + $0x58] sm:$0xff]
        %v268 = vld [vmem:[%s227 + $0x60] sm:$0xff]
        %v269 = vld [vmem:[%s227 + $0x68] sm:$0xff]
        %v270 = vld [vmem:[%s227 + $0x70] sm:$0xff]
        %v271 = vld [vmem:[%s227 + $0x78] sm:$0xff]
        %v272 = vld [vmem:[%s227 + $0x80] sm:$0xff]
        %v273 = vld [vmem:[%s227 + $0x88] sm:$0xff]
        %v274 = vld [vmem:[%s227 + $0x90] sm:$0xff]
        %v275 = vld [vmem:[%s227 + $0x98] sm:$0xff]
        %v276 = vld [vmem:[%s227 + $0xa0] sm:$0xff]
        %v277 = vld [vmem:[%s227 + $0xa8] sm:$0xff]
        %v278 = vld [vmem:[%s227 + $0xb0] sm:$0xff]
        %v279 = vld [vmem:[%s227 + $0xb8] sm:$0xff]
        %v280 = vld [vmem:[%s227 + $0xc0] sm:$0xff]
        %v281 = vld [vmem:[%s227 + $0xc8] sm:$0xff]
        %v282 = vld [vmem:[%s227 + $0xd0] sm:$0xff]
        %v283 = vld [vmem:[%s227 + $0xd8] sm:$0xff]
        %v284 = vld [vmem:[%s227 + $0xe0] sm:$0xf]
        %v285 = vld [vmem:[%s227 + $0xe8] sm:$0xf]
        %v286 = vld [vmem:[%s227 + $0xf0] sm:$0xf]
        %v287 = vld [vmem:[%s227 + $0xf8] sm:$0xf]
        %v288 = vld [vmem:[%s1] sm:$0xff]
        %290 = vset.pattern.permute.xlu0 0
        %291 = vperm.xlu0 %290, %v288
        %v292 = vpop.permute.xlu0 %291
        %vm294 = vcmask 490496
        %v296 = vsel %vm294, %v255, 0
        %vm298 = vcmask 1043456
        %v300 = vsel %vm298, %v284, 0
        %v303 = vsel %vm298, %v285, 0
        %v306 = vsel %vm298, %v286, 0
        %v309 = vsel %vm298, %v287, 0
        %311 = vmatprep.subr.mxu0 %v257
        %312 = vmatpush1.msra.mxu0 %v256
        %313 = vmatprep.subr.mxu0 %v261
        %314 = vmatpush1.msra.mxu0 %v260
        %315 = vmatprep.subr.mxu0 %v265
        %316 = vmatpush1.msra.mxu0 %v264
        %317 = vmatprep.subr.mxu0 %v269
        %318 = vmatpush1.msra.mxu0 %v268
        %319 = vmatprep.subr.mxu0 %v273
        %320 = vmatpush1.msra.mxu0 %v272
        %321 = vmatprep.subr.mxu0 %v277
        %322 = vmatpush1.msra.mxu0 %v276
        %323 = vmatprep.subr.mxu0 %v281
        %324 = vmatpush1.msra.mxu0 %v280
        %325 = vmatprep.subr.mxu0 %v303
        %326 = vmatpush1.msra.mxu0 %v300
        %327 = vmatprep.subr.mxu0 0.0
        %328 = vmatpush1.msra.mxu0 0.0
        %329 = vmatprep.subr.mxu0 0.0
        %330 = vmatpush1.msra.mxu0 0.0
        %331 = vmatprep.subr.mxu0 0.0
        %332 = vmatpush1.msra.mxu0 0.0
        %333 = vmatprep.subr.mxu0 0.0
        %334 = vmatpush1.msra.mxu0 0.0
        %335 = vmatprep.subr.mxu0 0.0
        %336 = vmatpush1.msra.mxu0 0.0
        %337 = vmatprep.subr.mxu0 0.0
        %338 = vmatpush1.msra.mxu0 0.0
        %339 = vmatprep.subr.mxu0 0.0
        %340 = vmatpush1.msra.mxu0 0.0
        %341 = vmatprep.subr.mxu0 0.0
        %342 = vmatpush1.msra.mxu0 0.0
        %343 = vmatprep.subr.mxu0 0.0
        %344 = vmatpush1.msra.mxu0 0.0
        %345 = vmatprep.subr.mxu0 0.0
        %346 = vmatpush1.msra.mxu0 0.0
        %347 = vmatprep.subr.mxu0 0.0
        %348 = vmatpush1.msra.mxu0 0.0
        %349 = vmatprep.subr.mxu0 0.0
        %350 = vmatpush1.msra.mxu0 0.0
        %351 = vmatprep.subr.mxu0 0.0
        %352 = vmatpush1.msra.mxu0 0.0
        %353 = vmatprep.subr.mxu0 0.0
        %354 = vmatpush1.msra.mxu0 0.0
        %355 = vmatprep.subr.mxu0 0.0
        %356 = vmatpush1.msra.mxu0 0.0
        %357 = vmatprep.subr.mxu0 0.0
        %358 = vmatpush1.msra.mxu0 0.0
        %359 = vmatprep.subr.mxu0 0.0
        %360 = vmatpush1.msra.mxu0 0.0
        %361 = vmatprep.subr.mxu0 0.0
        %362 = vmatpush1.msra.mxu0 0.0
        %363 = vmatprep.subr.mxu0 0.0
        %364 = vmatpush1.msra.mxu0 0.0
        %365 = vmatprep.subr.mxu0 0.0
        %366 = vmatpush1.msra.mxu0 0.0
        %367 = vmatprep.subr.mxu0 0.0
        %368 = vmatpush1.msra.mxu0 0.0
        %369 = vmatprep.subr.mxu0 0.0
        %370 = vmatpush1.msra.mxu0 0.0
        %371 = vmatprep.subr.mxu0 0.0
        %372 = vmatpush1.msra.mxu0 0.0
        %373 = vmatprep.subr.mxu0 0.0
        %374 = vmatpush1.msra.mxu0 0.0
        %375 = vmatprep.mubr.f32.mxu0 0.0
        %376 = vmatmul.mubr.f32.gmra.mrb[0].mxu0 %v296
        %v377 = vpop.f32.mrb[0].mxu0
        %v378 = vadd.f32 %v292, %v377
        %v379 = vpop.f32.mrb[0].mxu0
        %v380 = vadd.f32 %v292, %v379
        %381 = vdwg.mxu0
        %382 = vmatprep.subr.mxu0 %v259
        %383 = vmatpush1.msra.mxu0 %v258
        %384 = vmatprep.subr.mxu0 %v263
        %385 = vmatpush1.msra.mxu0 %v262
        %386 = vmatprep.subr.mxu0 %v267
        %387 = vmatpush1.msra.mxu0 %v266
        %388 = vmatprep.subr.mxu0 %v271
        %389 = vmatpush1.msra.mxu0 %v270
        %390 = vmatprep.subr.mxu0 %v275
        %391 = vmatpush1.msra.mxu0 %v274
        %392 = vmatprep.subr.mxu0 %v279
        %393 = vmatpush1.msra.mxu0 %v278
        %394 = vmatprep.subr.mxu0 %v283
        %395 = vmatpush1.msra.mxu0 %v282
        %396 = vmatprep.subr.mxu0 %v309
        %397 = vmatpush1.msra.mxu0 %v306
        %398 = vmatprep.subr.mxu0 0.0
        %399 = vmatpush1.msra.mxu0 0.0
        %400 = vmatprep.subr.mxu0 0.0
        %401 = vmatpush1.msra.mxu0 0.0
        %402 = vmatprep.subr.mxu0 0.0
        %403 = vmatpush1.msra.mxu0 0.0
        %404 = vmatprep.subr.mxu0 0.0
        %405 = vmatpush1.msra.mxu0 0.0
        %406 = vmatprep.subr.mxu0 0.0
        %407 = vmatpush1.msra.mxu0 0.0
        %408 = vmatprep.subr.mxu0 0.0
        %409 = vmatpush1.msra.mxu0 0.0
        %410 = vmatprep.subr.mxu0 0.0
        %411 = vmatpush1.msra.mxu0 0.0
        %412 = vmatprep.subr.mxu0 0.0
        %413 = vmatpush1.msra.mxu0 0.0
        %414 = vmatprep.subr.mxu0 0.0
        %415 = vmatpush1.msra.mxu0 0.0
        %416 = vmatprep.subr.mxu0 0.0
        %417 = vmatpush1.msra.mxu0 0.0
        %418 = vmatprep.subr.mxu0 0.0
        %419 = vmatpush1.msra.mxu0 0.0
        %420 = vmatprep.subr.mxu0 0.0
        %421 = vmatpush1.msra.mxu0 0.0
        %422 = vmatprep.subr.mxu0 0.0
        %423 = vmatpush1.msra.mxu0 0.0
        %424 = vmatprep.subr.mxu0 0.0
        %425 = vmatpush1.msra.mxu0 0.0
        %426 = vmatprep.subr.mxu0 0.0
        %427 = vmatpush1.msra.mxu0 0.0
        %428 = vmatprep.subr.mxu0 0.0
        %429 = vmatpush1.msra.mxu0 0.0
        %430 = vmatprep.subr.mxu0 0.0
        %431 = vmatpush1.msra.mxu0 0.0
        %432 = vmatprep.subr.mxu0 0.0
        %433 = vmatpush1.msra.mxu0 0.0
        %434 = vmatprep.subr.mxu0 0.0
        %435 = vmatpush1.msra.mxu0 0.0
        %436 = vmatprep.subr.mxu0 0.0
        %437 = vmatpush1.msra.mxu0 0.0
        %438 = vmatprep.subr.mxu0 0.0
        %439 = vmatpush1.msra.mxu0 0.0
        %440 = vmatprep.subr.mxu0 0.0
        %441 = vmatpush1.msra.mxu0 0.0
        %442 = vmatprep.subr.mxu0 0.0
        %443 = vmatpush1.msra.mxu0 0.0
        %444 = vmatprep.subr.mxu0 0.0
        %445 = vmatpush1.msra.mxu0 0.0
        %446 = vmatprep.mubr.f32.mxu0 0.0
        %447 = vmatmul.mubr.f32.gmra.mrb[0].mxu0 %v296
        %v448 = vpop.f32.mrb[0].mxu0
        %v449 = vadd.f32 %v292, %v448
        %v450 = vpop.f32.mrb[0].mxu0
        %v451 = vadd.f32 %v292, %v450
        %452 = vdwg.mxu0
        %v453 = vmax.f32 %v378, 0.0
        %v454 = vmax.f32 %v380, 0.0
        %v455 = vmax.f32 %v449, 0.0
        %v456 = vmax.f32 %v451, 0.0
        %457 = vst [vmem:[%s253] sm:$0xff] %v453
        %458 = vst [vmem:[%s253 + $0x8] sm:$0xff] %v454
        %459 = vst [vmem:[%s253 + $0x10] sm:$0xff] %v455
        %460 = vst [vmem:[%s253 + $0x18] sm:$0xff] %v456
        %s461 = smul.u32 4, %s14
        %p462 = scmp.lt.s32.totalorder %s461, 7
        %s463 = scalar_select %p462, %s461, 7
        %s464 = smul.addr %s463, 8
        %s465 = scalar_lea.vmem %s3, %s464
        // Predicated region
        $region56: #{cnn_linear_forward.5} parent=50 // pred_check
          %p466 = pneg %p100
        $region57: #{cnn_linear_forward.5} parent=50 // pred_check_branch
          %468 = sbr.rel (%p466) target = $region59
        $region58: #{cnn_linear_forward.5} parent=50 // pred_region
          %s469 = smul.u32 4, %s14
        $region59: #{cnn_linear_forward.5} parent=50 // pred_fallthru
          _
      $region51: #{cnn_linear_forward.5} parent=5 // pred_fallthru
        _
      %p470 = scmp.le.s32.totalorder 2, %s9
      // Predicated region
      $region60: #{cnn_linear_forward.5} parent=5 // pred_check
        %p471 = pneg %p470
      $region61: #{cnn_linear_forward.5} parent=5 // pred_check_branch
        %473 = sbr.rel (%p471) target = $region63
      $region62: #{cnn_linear_forward.5} parent=5 // pred_region
        %s474 = ssub.s32 %s9, 2
        // Predicated region
        $region64: #{cnn_linear_forward.5} parent=62 // pred_check
          %p475 = pneg %p106
        $region65: #{cnn_linear_forward.5} parent=62 // pred_check_branch
          %477 = sbr.rel (%p475) target = $region67
        $region66: #{cnn_linear_forward.5} parent=62 // pred_region
          %s478 = smul.u32 4, %s15
          %p479 = scmp.lt.s32.totalorder %s478, 7
          %s480 = scalar_select %p479, %s478, 7
          %s481 = smul.addr %s480, 8
          %s482 = scalar_lea.vmem %s3, %s481
        $region67: #{cnn_linear_forward.5} parent=62 // pred_fallthru
          _
      $region63: #{cnn_linear_forward.5} parent=5 // pred_fallthru
        _
    $region6: #{cnn_linear_forward.5} parent=1 // loop_footer
      %s13 = sadd.s32 1, %s9
    $region7: #{cnn_linear_forward.5} parent=1 // loop_footer_branch
      %8 = sbr.rel target = $region3
    $region8: #{cnn_linear_forward.5} parent=1 // loop_exit
      _

// kernel: cnn_linear_forward.6
$region0: #{cnn_linear_forward.6}
  #allocation0 [shape = 'u32[]', space=smem, size = 0x4, offset = 0x4, fixed_abs, tag = 'smem constant byte address 0x4 - core index']
  #allocation1 [shape = 'u32[144,128]{1,0:T(1,128)}', space=vmem, size = 0x12000, scoped, tag = 'internal scratch']
  %s0 = inlined_call_operand.vmem [shape: f32[16,120], index: 0, kind: input, shape index: {}]
  %s1 = inlined_call_operand.vmem [shape: f32[16,1], index: 1, kind: input, shape index: {}]
  %s2 = inlined_call_operand.vmem [shape: f32[120,128], index: 2, kind: input, shape index: {}]
  %s3 = inlined_call_operand.vmem [shape: f32[16,128], index: 3, kind: output, shape index: {}]
  %s4 = sld [smem:[#allocation0]]
  $region22: #{cnn_linear_forward.6} parent=0
    _
  %s6 = ssub.s32 1, %s4
  %s7 = scalar_select 0, %s6, %s4
  // Predicated region
  $region2: #{cnn_linear_forward.6} parent=0 // pred_check
    _
  $region3: #{cnn_linear_forward.6} parent=0 // pred_check_branch
    %9 = sbr.rel (0) target = $region5
  $region4: #{cnn_linear_forward.6} parent=0 // pred_region
    _
  $region5: #{cnn_linear_forward.6} parent=0 // pred_fallthru
    _
  // Predicated region
  $region6: #{cnn_linear_forward.6} parent=0 // pred_check
    _
  $region7: #{cnn_linear_forward.6} parent=0 // pred_check_branch
    %11 = sbr.rel (0) target = $region9
  $region8: #{cnn_linear_forward.6} parent=0 // pred_region
    _
  $region9: #{cnn_linear_forward.6} parent=0 // pred_fallthru
    _
  // Predicated region
  $region10: #{cnn_linear_forward.6} parent=0 // pred_check
    _
  $region11: #{cnn_linear_forward.6} parent=0 // pred_check_branch
    %13 = sbr.rel (0) target = $region13
  $region12: #{cnn_linear_forward.6} parent=0 // pred_region
    _
  $region13: #{cnn_linear_forward.6} parent=0 // pred_fallthru
    _
  %v14 = vld [vmem:[%s0] sm:$0xff]
  %v15 = vld [vmem:[%s0 + $0x8] sm:$0xff]
  %v16 = vld [vmem:[%s2] sm:$0xff]
  %v17 = vld [vmem:[%s2 + $0x8] sm:$0xff]
  %v18 = vld [vmem:[%s2 + $0x10] sm:$0xff]
  %v19 = vld [vmem:[%s2 + $0x18] sm:$0xff]
  %v20 = vld [vmem:[%s2 + $0x20] sm:$0xff]
  %v21 = vld [vmem:[%s2 + $0x28] sm:$0xff]
  %v22 = vld [vmem:[%s2 + $0x30] sm:$0xff]
  %v23 = vld [vmem:[%s2 + $0x38] sm:$0xff]
  %v24 = vld [vmem:[%s2 + $0x40] sm:$0xff]
  %v25 = vld [vmem:[%s2 + $0x48] sm:$0xff]
  %v26 = vld [vmem:[%s2 + $0x50] sm:$0xff]
  %v27 = vld [vmem:[%s2 + $0x58] sm:$0xff]
  %v28 = vld [vmem:[%s2 + $0x60] sm:$0xff]
  %v29 = vld [vmem:[%s2 + $0x68] sm:$0xff]
  %v30 = vld [vmem:[%s2 + $0x70] sm:$0xff]
  %v31 = vld [vmem:[%s1] sm:$0xff]
  %v32 = vld [vmem:[%s1 + $0x8] sm:$0xff]
  %34 = vset.pattern.permute.xlu0 0
  %35 = vperm.xlu0 %34, %v31
  %v36 = vpop.permute.xlu0 %35
  %39 = vset.pattern.permute.xlu0 0
  %40 = vperm.xlu0 %39, %v32
  %v41 = vpop.permute.xlu0 %40
  %vm43 = vcmask 982016
  %v45 = vsel %vm43, %v14, 0
  %v48 = vsel %vm43, %v15, 0
  %50 = vmatprep.subr.mxu0 0.0
  %51 = vmatpush1.msra.mxu0 %v16
  %52 = vmatprep.subr.mxu0 0.0
  %53 = vmatpush1.msra.mxu0 %v17
  %54 = vmatprep.subr.mxu0 0.0
  %55 = vmatpush1.msra.mxu0 %v18
  %56 = vmatprep.subr.mxu0 0.0
  %57 = vmatpush1.msra.mxu0 %v19
  %58 = vmatprep.subr.mxu0 0.0
  %59 = vmatpush1.msra.mxu0 %v20
  %60 = vmatprep.subr.mxu0 0.0
  %61 = vmatpush1.msra.mxu0 %v21
  %62 = vmatprep.subr.mxu0 0.0
  %63 = vmatpush1.msra.mxu0 %v22
  %64 = vmatprep.subr.mxu0 0.0
  %65 = vmatpush1.msra.mxu0 %v23
  %66 = vmatprep.subr.mxu0 0.0
  %67 = vmatpush1.msra.mxu0 %v24
  %68 = vmatprep.subr.mxu0 0.0
  %69 = vmatpush1.msra.mxu0 %v25
  %70 = vmatprep.subr.mxu0 0.0
  %71 = vmatpush1.msra.mxu0 %v26
  %72 = vmatprep.subr.mxu0 0.0
  %73 = vmatpush1.msra.mxu0 %v27
  %74 = vmatprep.subr.mxu0 0.0
  %75 = vmatpush1.msra.mxu0 %v28
  %76 = vmatprep.subr.mxu0 0.0
  %77 = vmatpush1.msra.mxu0 %v29
  %78 = vmatprep.subr.mxu0 0.0
  %79 = vmatpush1.msra.mxu0 %v30
  %80 = vmatprep.subr.mxu0 0.0
  %81 = vmatpush1.msra.mxu0 0.0
  %82 = vmatprep.subr.mxu0 0.0
  %83 = vmatpush1.msra.mxu0 0.0
  %84 = vmatprep.subr.mxu0 0.0
  %85 = vmatpush1.msra.mxu0 0.0
  %86 = vmatprep.subr.mxu0 0.0
  %87 = vmatpush1.msra.mxu0 0.0
  %88 = vmatprep.subr.mxu0 0.0
  %89 = vmatpush1.msra.mxu0 0.0
  %90 = vmatprep.subr.mxu0 0.0
  %91 = vmatpush1.msra.mxu0 0.0
  %92 = vmatprep.subr.mxu0 0.0
  %93 = vmatpush1.msra.mxu0 0.0
  %94 = vmatprep.subr.mxu0 0.0
  %95 = vmatpush1.msra.mxu0 0.0
  %96 = vmatprep.subr.mxu0 0.0
  %97 = vmatpush1.msra.mxu0 0.0
  %98 = vmatprep.subr.mxu0 0.0
  %99 = vmatpush1.msra.mxu0 0.0
  %100 = vmatprep.subr.mxu0 0.0
  %101 = vmatpush1.msra.mxu0 0.0
  %102 = vmatprep.subr.mxu0 0.0
  %103 = vmatpush1.msra.mxu0 0.0
  %104 = vmatprep.subr.mxu0 0.0
  %105 = vmatpush1.msra.mxu0 0.0
  %106 = vmatprep.subr.mxu0 0.0
  %107 = vmatpush1.msra.mxu0 0.0
  %108 = vmatprep.subr.mxu0 0.0
  %109 = vmatpush1.msra.mxu0 0.0
  %110 = vmatprep.subr.mxu0 0.0
  %111 = vmatpush1.msra.mxu0 0.0
  %112 = vmatprep.subr.mxu0 0.0
  %113 = vmatpush1.msra.mxu0 0.0
  %114 = vmatprep.mubr.f32.mxu0 0.0
  %115 = vmatmul.mubr.f32.gmra.mrb[0].mxu0 %v45
  %v116 = vpop.f32.mrb[0].mxu0
  %v117 = vadd.f32 %v36, %v116
  %v118 = vpop.f32.mrb[0].mxu0
  %119 = vmatprep.mubr.f32.mxu0 0.0
  %120 = vmatmul.mubr.f32.gmra.mrb[0].mxu0 %v48
  %v121 = vpop.f32.mrb[0].mxu0
  %v122 = vadd.f32 %v41, %v121
  %v123 = vpop.f32.mrb[0].mxu0
  %124 = vdwg.mxu0
  %v125 = vmax.f32 %v117, 0.0
  %v126 = vmax.f32 %v122, 0.0
  %127 = vst [vmem:[%s3] sm:$0xff] %v125
  %128 = vst [vmem:[%s3 + $0x8] sm:$0xff] %v126
  // Predicated region
  $region14: #{cnn_linear_forward.6} parent=0 // pred_check
    _
  $region15: #{cnn_linear_forward.6} parent=0 // pred_check_branch
    %130 = sbr.rel (0) target = $region17
  $region16: #{cnn_linear_forward.6} parent=0 // pred_region
    _
  $region17: #{cnn_linear_forward.6} parent=0 // pred_fallthru
    _
  // Predicated region
  $region18: #{cnn_linear_forward.6} parent=0 // pred_check
    _
  $region19: #{cnn_linear_forward.6} parent=0 // pred_check_branch
    %132 = sbr.rel (0) target = $region21
  $region20: #{cnn_linear_forward.6} parent=0 // pred_region
    _
  $region21: #{cnn_linear_forward.6} parent=0 // pred_fallthru
    _

// kernel: cnn_linear_forward.7
$region0: #{cnn_linear_forward.7}
  #allocation0 [shape = 'u32[]', space=smem, size = 0x4, offset = 0x4, fixed_abs, tag = 'smem constant byte address 0x4 - core index']
  #allocation1 [shape = 'u32[144,128]{1,0:T(1,128)}', space=vmem, size = 0x12000, scoped, tag = 'internal scratch']
  %s0 = inlined_call_operand.vmem [shape: f32[2,32], index: 0, kind: input, shape index: {}]
  %s1 = inlined_call_operand.vmem [shape: f32[32,10], index: 1, kind: input, shape index: {}]
  %s2 = inlined_call_operand.vmem [shape: f32[1,10], index: 2, kind: input, shape index: {}]
  %s3 = inlined_call_operand.hbm [shape: f32[2,10], index: 3, kind: output, shape index: {}]
  %s4 = sld [smem:[#allocation0]]
  $region22: #{cnn_linear_forward.7} parent=0
    _
  %s6 = ssub.s32 1, %s4
  %s7 = scalar_select 0, %s6, %s4
  $region1: #{cnn_linear_forward.7} parent=0
    #allocation2 [shape = 'u8[1024]{0}', space=vmem, size = 0x400, scoped, tag = 'output window, operand 0, single buffered']
    #allocation3 [shape = 's32[1]{0}', space=sflag, size = 0x4, scoped, tag = 'scoped memory for cnn_linear_forward.7']
    %8 = vsyncpa [#allocation3], 0
    // Predicated region
    $region2: #{cnn_linear_forward.7} parent=1 // pred_check
      _
    $region3: #{cnn_linear_forward.7} parent=1 // pred_check_branch
      %10 = sbr.rel (0) target = $region5
    $region4: #{cnn_linear_forward.7} parent=1 // pred_region
      _
    $region5: #{cnn_linear_forward.7} parent=1 // pred_fallthru
      _
    // Predicated region
    $region6: #{cnn_linear_forward.7} parent=1 // pred_check
      _
    $region7: #{cnn_linear_forward.7} parent=1 // pred_check_branch
      %12 = sbr.rel (0) target = $region9
    $region8: #{cnn_linear_forward.7} parent=1 // pred_region
      _
    $region9: #{cnn_linear_forward.7} parent=1 // pred_fallthru
      _
    // Predicated region
    $region10: #{cnn_linear_forward.7} parent=1 // pred_check
      _
    $region11: #{cnn_linear_forward.7} parent=1 // pred_check_branch
      %14 = sbr.rel (0) target = $region13
    $region12: #{cnn_linear_forward.7} parent=1 // pred_region
      _
    $region13: #{cnn_linear_forward.7} parent=1 // pred_fallthru
      _
    %v15 = vld [vmem:[%s0] sm:$0x3]
    %v16 = vld [vmem:[%s1] sm:$0xff]
    %v17 = vld [vmem:[%s1 + $0x8] sm:$0xff]
    %v18 = vld [vmem:[%s1 + $0x10] sm:$0xff]
    %v19 = vld [vmem:[%s1 + $0x18] sm:$0xff]
    %v20 = vld [vmem:[%s2] sm:$0x1]
    %v22 = vlaneseq
    %v23 = vshrl.u32 %v22, 7
    %v24 = vsub.s32 0, %v23
    %v25 = vrot.slane %v20, %v24
    %vm27 = vcmask 261120
    %v29 = vsel %vm27, %v15, 0
    %31 = vmatprep.subr.mxu0 0.0
    %32 = vmatpush1.msra.mxu0 %v16
    %33 = vmatprep.subr.mxu0 0.0
    %34 = vmatpush1.msra.mxu0 %v17
    %35 = vmatprep.subr.mxu0 0.0
    %36 = vmatpush1.msra.mxu0 %v18
    %37 = vmatprep.subr.mxu0 0.0
    %38 = vmatpush1.msra.mxu0 %v19
    %39 = vmatprep.subr.mxu0 0.0
    %40 = vmatpush1.msra.mxu0 0.0
    %41 = vmatprep.subr.mxu0 0.0
    %42 = vmatpush1.msra.mxu0 0.0
    %43 = vmatprep.subr.mxu0 0.0
    %44 = vmatpush1.msra.mxu0 0.0
    %45 = vmatprep.subr.mxu0 0.0
    %46 = vmatpush1.msra.mxu0 0.0
    %47 = vmatprep.subr.mxu0 0.0
    %48 = vmatpush1.msra.mxu0 0.0
    %49 = vmatprep.subr.mxu0 0.0
    %50 = vmatpush1.msra.mxu0 0.0
    %51 = vmatprep.subr.mxu0 0.0
    %52 = vmatpush1.msra.mxu0 0.0
    %53 = vmatprep.subr.mxu0 0.0
    %54 = vmatpush1.msra.mxu0 0.0
    %55 = vmatprep.subr.mxu0 0.0
    %56 = vmatpush1.msra.mxu0 0.0
    %57 = vmatprep.subr.mxu0 0.0
    %58 = vmatpush1.msra.mxu0 0.0
    %59 = vmatprep.subr.mxu0 0.0
    %60 = vmatpush1.msra.mxu0 0.0
    %61 = vmatprep.subr.mxu0 0.0
    %62 = vmatpush1.msra.mxu0 0.0
    %63 = vmatprep.subr.mxu0 0.0
    %64 = vmatpush1.msra.mxu0 0.0
    %65 = vmatprep.subr.mxu0 0.0
    %66 = vmatpush1.msra.mxu0 0.0
    %67 = vmatprep.subr.mxu0 0.0
    %68 = vmatpush1.msra.mxu0 0.0
    %69 = vmatprep.subr.mxu0 0.0
    %70 = vmatpush1.msra.mxu0 0.0
    %71 = vmatprep.subr.mxu0 0.0
    %72 = vmatpush1.msra.mxu0 0.0
    %73 = vmatprep.subr.mxu0 0.0
    %74 = vmatpush1.msra.mxu0 0.0
    %75 = vmatprep.subr.mxu0 0.0
    %76 = vmatpush1.msra.mxu0 0.0
    %77 = vmatprep.subr.mxu0 0.0
    %78 = vmatpush1.msra.mxu0 0.0
    %79 = vmatprep.subr.mxu0 0.0
    %80 = vmatpush1.msra.mxu0 0.0
    %81 = vmatprep.subr.mxu0 0.0
    %82 = vmatpush1.msra.mxu0 0.0
    %83 = vmatprep.subr.mxu0 0.0
    %84 = vmatpush1.msra.mxu0 0.0
    %85 = vmatprep.subr.mxu0 0.0
    %86 = vmatpush1.msra.mxu0 0.0
    %87 = vmatprep.subr.mxu0 0.0
    %88 = vmatpush1.msra.mxu0 0.0
    %89 = vmatprep.subr.mxu0 0.0
    %90 = vmatpush1.msra.mxu0 0.0
    %91 = vmatprep.subr.mxu0 0.0
    %92 = vmatpush1.msra.mxu0 0.0
    %93 = vmatprep.subr.mxu0 0.0
    %94 = vmatpush1.msra.mxu0 0.0
    %95 = vmatprep.mubr.f32.mxu0 0.0
    %96 = vmatmul.mubr.f32.gmra.mrb[0].mxu0 %v29
    %v97 = vpop.f32.mrb[0].mxu0
    %v98 = vadd.f32 %v25, %v97
    %v99 = vpop.f32.mrb[0].mxu0
    %100 = vdwg.mxu0
    %vm101 = vcmask 74752
    %v102 = vsel %vm101, %v98, -inf
    %103 = vmax.xlane.f32.xlu0 %v102
    %v104 = vpop.xlane.xlu0 %103
    %v105 = vsub.f32 %v98, %v104
    %v106 = vmul.f32 %v105, 1.442695
    %v107 = vpow.pop %v106
    %v108 = vsel %vm101, %v107, 0.0
    %109 = vadd.xlane.f32.xlu0 %v108
    %v110 = vpop.xlane.xlu0 %109
    %v111 = vlog2.pop %v110
    %v112 = vmul.f32 %v111, 0.6931472
    %v113 = vsub.f32 %v105, %v112
    %114 = vst.msk [vmem:[#allocation2] sm:$0x3] %vm101, %v113
    // Predicated region
    $region14: #{cnn_linear_forward.7} parent=1 // pred_check
      _
    $region15: #{cnn_linear_forward.7} parent=1 // pred_check_branch
      %116 = sbr.rel (0) target = $region17
    $region16: #{cnn_linear_forward.7} parent=1 // pred_region
      %s118 = ssub.s32 32, 32
      %119 = vsyncadd [#allocation3], %s118
      %s121 = sshll.u32 [#allocation2], 4
      %s122 = int_to_ptr.vmem [resolvable:$true] %s121
      %124 = dma.vmem_to_hbm [thread:$0]  %s122, 32, %s3, [#allocation3]
    $region17: #{cnn_linear_forward.7} parent=1 // pred_fallthru
      _
    // Predicated region
    $region18: #{cnn_linear_forward.7} parent=1 // pred_check
      _
    $region19: #{cnn_linear_forward.7} parent=1 // pred_check_branch
      %126 = sbr.rel (0) target = $region21
    $region20: #{cnn_linear_forward.7} parent=1 // pred_region
      %127 = dma.done [#allocation3], 32
    $region21: #{cnn_linear_forward.7} parent=1 // pred_fallthru
      _
    %128 = vsyncpa [#allocation3], 1

</llo_original>
